<compile_context>
chip_gen: v7x
topology: tpu7x:2x2x1
jax: 0.10.0
libtpu: 0.0.40
codegen_flags: <defaults>
</compile_context>

<pallas_src>
import functools

import jax
import jax.numpy as jnp
from jax.experimental import pallas as pl
from jax.experimental.pallas import tpu as pltpu

LEAKY_SLOPE = 0.1


def _leaky(v):
    return jnp.where(v > 0, v, LEAKY_SLOPE * v)


def shortcut_kernel(x_ref, w1_ref, b1_ref, w2_ref, b2_ref, o_ref, slab_ref,
                    *, width):
    # x_ref   : (H*W, Cin)      f32   one image, rows = flattened spatial
    # w1_ref  : (Cin, Cmid)     bf16  folded 1x1 conv+BN weight
    # b1_ref  : (1, Cmid)       f32   folded 1x1 conv+BN bias
    # w2_ref  : (9*Cmid, Cout)  bf16  folded 3x3 conv+BN weight, (ky,kx,cin) major
    # b2_ref  : (1, Cout)       f32   folded 3x3 conv+BN bias
    # o_ref   : (H*W, Cout)
    # slab_ref: (>= H*W + 2*W + 2, Cmid) f32 scratch, flat zero-padded image
    HW, Cin = x_ref.shape
    Cmid = w1_ref.shape[1]
    W = width

    x2d = x_ref[...]                                     # f32, reused for residual

    # ---- conv1: 1x1 conv == channel matmul (bf16 in, f32 accumulate) ----
    y1 = jnp.dot(x2d.astype(jnp.bfloat16), w1_ref[...],
                 preferred_element_type=jnp.float32)
    y1 = _leaky(y1 + b1_ref[...])                        # (HW, Cmid) f32

    # ---- conv2: 3x3 SAME via flat-slab im2col + one K = 9*Cmid matmul ----
    # slab rows [W+1, W+1+HW) hold y1; the >= W+1 zero rows on each side give
    # the top/bottom (and corner) zero padding in flattened h*W + w coords.
    slab_ref[...] = jnp.zeros_like(slab_ref)
    slab_ref[pl.ds(W + 1, HW), :] = y1

    # Edge masks: kx=0 (dx=-1) taps are invalid at w==0, kx=2 (dx=+1) taps are
    # invalid at w==W-1 (a flat row shift would otherwise wrap to the adjacent
    # image row).
    w_pos = jax.lax.broadcasted_iota(jnp.int32, (HW, Cmid), 0) % W
    not_left = w_pos > 0
    not_right = w_pos < (W - 1)

    taps = []
    for ky in range(3):
        for kx in range(3):
            tap = slab_ref[pl.ds(ky * W + kx, HW), :]    # (HW, Cmid)
            if kx == 0:
                tap = jnp.where(not_left, tap, 0.0)
            elif kx == 2:
                tap = jnp.where(not_right, tap, 0.0)
            taps.append(tap)
    patches = jnp.concatenate(taps, axis=-1)             # (HW, 9*Cmid)

    y2 = jnp.dot(patches.astype(jnp.bfloat16), w2_ref[...],
                 preferred_element_type=jnp.float32)
    y2 = _leaky(y2 + b2_ref[...])                        # (HW, Cout) f32

    # ---- residual add (Cout == Cin), 2-D store, no in-kernel reshape ----
    o_ref[...] = (y2 + x2d).astype(o_ref.dtype)


def shortcut_block(x_nchw, w1_mat, b1, w2_flat, b2):
    """x_nchw: (N, Cin, H, W) f32; w1_mat: (Cin, Cmid); w2_flat: (9*Cmid, Cout).

    Returns (N, Cout, H, W) f32.
    """
    N, Cin, H, W = x_nchw.shape
    Cmid = w1_mat.shape[1]
    Cout = w2_flat.shape[1]
    assert Cin == Cout, "residual add requires Cin == Cout"
    HW = H * W

    # NCHW -> NHWC -> (N, H*W, C): channels on the lane axis, rows on sublanes.
    # (If this block sits inside a larger NHWC network, drop these transposes
    # and feed (N, H*W, C) activations end-to-end.)
    x2 = jnp.transpose(x_nchw, (0, 2, 3, 1)).reshape(N, HW, Cin)

    w1_bf = w1_mat.astype(jnp.bfloat16)
    w2_bf = w2_flat.astype(jnp.bfloat16)
    b1_row = b1.reshape(1, Cmid).astype(jnp.float32)
    b2_row = b2.reshape(1, Cout).astype(jnp.float32)

    # Flat zero-padded slab rows (>= HW + 2W + 2, rounded up to the sublane tile).
    slab_rows = ((HW + 2 * W + 2 + 7) // 8) * 8

    kernel = functools.partial(shortcut_kernel, width=W)

    # TODO(synk): for realistic Darknet images (208x208+) tile over H with a
    # +/-1-row halo per block so VMEM stays bounded on v7x (64 MiB physical).
    out2 = pl.pallas_call(
        kernel,
        out_shape=jax.ShapeDtypeStruct((N, HW, Cout), x_nchw.dtype),
        grid=(N,),
        in_specs=[
            pl.BlockSpec((None, HW, Cin), lambda n: (n, 0, 0)),
            pl.BlockSpec((Cin, Cmid), lambda n: (0, 0)),
            pl.BlockSpec((1, Cmid), lambda n: (0, 0)),
            pl.BlockSpec((9 * Cmid, Cout), lambda n: (0, 0)),
            pl.BlockSpec((1, Cout), lambda n: (0, 0)),
        ],
        out_specs=pl.BlockSpec((None, HW, Cout), lambda n: (n, 0, 0)),
        scratch_shapes=[pltpu.VMEM((slab_rows, Cmid), jnp.float32)],
        compiler_params=pltpu.CompilerParams(
            dimension_semantics=("parallel",)),
    )(x2, w1_bf, b1_row, w2_bf, b2_row)

    return jnp.transpose(out2.reshape(N, H, W, Cout), (0, 3, 1, 2))


def fold_bn(w_oihw, gamma, beta, mean, var, eps=1e-5):
    """Fold inference BatchNorm into a bias-free conv. Returns HWIO weight + bias."""
    scale = gamma / jnp.sqrt(var + eps)
    w = w_oihw * scale[:, None, None, None]
    b = beta - mean * scale
    w_hwio = jnp.transpose(w, (2, 3, 1, 0))              # OIHW -> HWIO
    return w_hwio, b


def ref_forward_nhwc(x, w1_hwio, b1, w2_hwio, b2):
    dn = ('NHWC', 'HWIO', 'NHWC')
    y = jax.lax.conv_general_dilated(x, w1_hwio, (1, 1), 'SAME',
                                     dimension_numbers=dn) + b1
    y = _leaky(y)
    y = jax.lax.conv_general_dilated(y, w2_hwio, (1, 1), 'SAME',
                                     dimension_numbers=dn) + b2
    y = _leaky(y)
    return y + x


if __name__ == "__main__":
    # ShortcutBlock(index=1, ac_type="leaky"): 64 -> 32 (1x1) -> 64 (3x3) + skip
    N, Cin, Cmid, Cout, H, W = 2, 64, 32, 64, 16, 16

    keys = jax.random.split(jax.random.PRNGKey(0), 12)
    x_nchw = jax.random.normal(keys[0], (N, Cin, H, W), jnp.float32)

    # Conv weights (PyTorch OIHW, bias-free convs followed by BatchNorm2d)
    w1_oihw = 0.1 * jax.random.normal(keys[1], (Cmid, Cin, 1, 1), jnp.float32)
    w2_oihw = 0.1 * jax.random.normal(keys[2], (Cout, Cmid, 3, 3), jnp.float32)
    # BatchNorm parameters (deterministic, synthetic)
    g1 = 1.0 + 0.1 * jax.random.normal(keys[3], (Cmid,), jnp.float32)
    bt1 = 0.1 * jax.random.normal(keys[4], (Cmid,), jnp.float32)
    mu1 = 0.1 * jax.random.normal(keys[5], (Cmid,), jnp.float32)
    var1 = 0.5 + jnp.abs(jax.random.normal(keys[6], (Cmid,), jnp.float32))
    g2 = 1.0 + 0.1 * jax.random.normal(keys[7], (Cout,), jnp.float32)
    bt2 = 0.1 * jax.random.normal(keys[8], (Cout,), jnp.float32)
    mu2 = 0.1 * jax.random.normal(keys[9], (Cout,), jnp.float32)
    var2 = 0.5 + jnp.abs(jax.random.normal(keys[10], (Cout,), jnp.float32))

    w1_hwio, b1 = fold_bn(w1_oihw, g1, bt1, mu1, var1)   # (1,1,Cin,Cmid), (Cmid,)
    w2_hwio, b2 = fold_bn(w2_oihw, g2, bt2, mu2, var2)   # (3,3,Cmid,Cout), (Cout,)

    w1_mat = w1_hwio.reshape(Cin, Cmid)                  # (Cin, Cmid)
    w2_flat = w2_hwio.reshape(9 * Cmid, Cout)            # (ky,kx,cin) row-major

    out = shortcut_block(x_nchw, w1_mat, b1, w2_flat, b2)
    out = jax.block_until_ready(out)

    # correctness check vs XLA reference conv (f32); kernel uses bf16 MXU
    # operands with f32 accumulation, hence the loosened tolerance.
    x_nhwc = jnp.transpose(x_nchw, (0, 2, 3, 1))
    ref = ref_forward_nhwc(x_nhwc, w1_hwio, b1, w2_hwio, b2)
    ref_nchw = jnp.transpose(ref, (0, 3, 1, 2))
    assert out.shape == (N, Cout, H, W)
    max_err = float(jnp.max(jnp.abs(out - ref_nchw)))
    assert jnp.allclose(out, ref_nchw, atol=5e-2, rtol=5e-2), max_err

    print("KERNEL_OK")
</pallas_src>

<mosaic_0001>
module attributes {stable_mosaic.version = 11 : i64} {
  func.func @shortcut_kernel(%arg0: i32, %arg1: memref<1x256x64xf32, #tpu.memory_space<vmem>>, %arg2: memref<64x32xbf16, #tpu.memory_space<vmem>>, %arg3: memref<1x32xf32, #tpu.memory_space<vmem>>, %arg4: memref<288x64xbf16, #tpu.memory_space<vmem>>, %arg5: memref<1x64xf32, #tpu.memory_space<vmem>>, %arg6: memref<1x256x64xf32, #tpu.memory_space<vmem>>, %arg7: memref<296x32xf32, #tpu.memory_space<vmem>>) attributes {dimension_semantics = [#tpu.dimension_semantics<parallel>], iteration_bounds = array<i64: 2>, scalar_prefetch = 0 : i64, scratch_operands = 1 : i64, tpu.core_type = #tpu.core_type<tc>, window_params = [{transform_indices = @transform_0, window_bounds = array<i64: 1, 256, 64>}, {pipeline_mode = #tpu.pipeline_mode<synchronous>, transform_indices = @transform_1, window_bounds = array<i64: 64, 32>}, {pipeline_mode = #tpu.pipeline_mode<synchronous>, transform_indices = @transform_2, window_bounds = array<i64: 1, 32>}, {pipeline_mode = #tpu.pipeline_mode<synchronous>, transform_indices = @transform_3, window_bounds = array<i64: 288, 64>}, {pipeline_mode = #tpu.pipeline_mode<synchronous>, transform_indices = @transform_4, window_bounds = array<i64: 1, 64>}, {transform_indices = @transform_5, window_bounds = array<i64: 1, 256, 64>}]} {
    %c0 = arith.constant 0 : index
    %c0_0 = arith.constant 0 : index
    %c0_1 = arith.constant 0 : index
    %0 = vector.load %arg1[%c0, %c0_0, %c0_1] : memref<1x256x64xf32, #tpu.memory_space<vmem>>, vector<1x256x64xf32>
    %1 = vector.shape_cast %0 : vector<1x256x64xf32> to vector<256x64xf32>
    %2 = arith.truncf %1 : vector<256x64xf32> to vector<256x64xbf16>
    %c0_2 = arith.constant 0 : index
    %c0_3 = arith.constant 0 : index
    %3 = vector.load %arg2[%c0_2, %c0_3] : memref<64x32xbf16, #tpu.memory_space<vmem>>, vector<64x32xbf16>
    %cst = arith.constant dense<0.000000e+00> : vector<256x32xf32>
    %4 = tpu.matmul %2, %3, %cst {dimension_numbers = #tpu.dot_dimension_numbers<[1], [0], [0], [1], [0, 0, 1, 1], [], []>} : vector<256x64xbf16>, vector<64x32xbf16>, vector<256x32xf32> -> vector<256x32xf32>
    %c0_4 = arith.constant 0 : index
    %c0_5 = arith.constant 0 : index
    %5 = vector.load %arg3[%c0_4, %c0_5] : memref<1x32xf32, #tpu.memory_space<vmem>>, vector<1x32xf32>
    %6 = vector.broadcast %5 : vector<1x32xf32> to vector<256x32xf32>
    %7 = arith.addf %4, %6 : vector<256x32xf32>
    %cst_6 = arith.constant 0.000000e+00 : f32
    %8 = vector.broadcast %cst_6 : f32 to vector<256x32xf32>
    %9 = arith.cmpf ogt, %7, %8 : vector<256x32xf32>
    %cst_7 = arith.constant 1.000000e-01 : f32
    %10 = vector.broadcast %cst_7 : f32 to vector<256x32xf32>
    %11 = arith.mulf %10, %7 : vector<256x32xf32>
    %12 = arith.select %9, %7, %11 : vector<256x32xi1>, vector<256x32xf32>
    %cst_8 = arith.constant 0.000000e+00 : f32
    %13 = vector.broadcast %cst_8 : f32 to vector<296x32xf32>
    %c0_9 = arith.constant 0 : index
    %c0_10 = arith.constant 0 : index
    %14 = vector.load %arg7[%c0_9, %c0_10] : memref<296x32xf32, #tpu.memory_space<vmem>>, vector<296x32xf32>
    tpu.vector_store %arg7[%c0_9, %c0_10], %13 {strides = array<i32>} : memref<296x32xf32, #tpu.memory_space<vmem>>, vector<296x32xf32>,
    %c17 = arith.constant 17 : index
    %c0_11 = arith.constant 0 : index
    %15 = vector.load %arg7[%c17, %c0_11] : memref<296x32xf32, #tpu.memory_space<vmem>>, vector<256x32xf32>
    tpu.vector_store %arg7[%c17, %c0_11], %12 {strides = array<i32>} : memref<296x32xf32, #tpu.memory_space<vmem>>, vector<256x32xf32>,
    %16 = tpu.iota {dimensions = array<i32: 0>} : vector<256x32xi32>
    %c16_i32 = arith.constant 16 : i32
    %c0_i32 = arith.constant 0 : i32
    %17 = arith.cmpi eq, %c16_i32, %c0_i32 : i32
    %c1_i32 = arith.constant 1 : i32
    %18 = arith.select %17, %c1_i32, %c16_i32 : i32
    %19 = vector.broadcast %18 : i32 to vector<256x32xi32>
    %20 = arith.remsi %16, %19 : vector<256x32xi32>
    %c0_i32_12 = arith.constant 0 : i32
    %21 = vector.broadcast %c0_i32_12 : i32 to vector<256x32xi32>
    %22 = arith.cmpi ne, %20, %21 : vector<256x32xi32>
    %c0_i32_13 = arith.constant 0 : i32
    %23 = vector.broadcast %c0_i32_13 : i32 to vector<256x32xi32>
    %24 = arith.cmpi slt, %20, %23 : vector<256x32xi32>
    %c0_i32_14 = arith.constant 0 : i32
    %25 = arith.cmpi slt, %18, %c0_i32_14 : i32
    %26 = vector.broadcast %25 : i1 to vector<256x32xi1>
    %27 = vector.broadcast %26 : vector<256x32xi1> to vector<256x32xi1>
    %28 = arith.xori %24, %27 : vector<256x32xi1>
    %29 = arith.andi %28, %22 : vector<256x32xi1>
    %30 = vector.broadcast %18 : i32 to vector<256x32xi32>
    %31 = arith.addi %20, %30 : vector<256x32xi32>
    %32 = arith.select %29, %31, %20 : vector<256x32xi1>, vector<256x32xi32>
    %c0_i32_15 = arith.constant 0 : i32
    %33 = vector.broadcast %c0_i32_15 : i32 to vector<256x32xi32>
    %34 = arith.cmpi sgt, %32, %33 : vector<256x32xi32>
    %c15_i32 = arith.constant 15 : i32
    %35 = vector.broadcast %c15_i32 : i32 to vector<256x32xi32>
    %36 = arith.cmpi slt, %32, %35 : vector<256x32xi32>
    %c0_16 = arith.constant 0 : index
    %c0_17 = arith.constant 0 : index
    %37 = vector.load %arg7[%c0_16, %c0_17] : memref<296x32xf32, #tpu.memory_space<vmem>>, vector<256x32xf32>
    %cst_18 = arith.constant 0.000000e+00 : f32
    %38 = vector.broadcast %cst_18 : f32 to vector<256x32xf32>
    %39 = arith.select %34, %37, %38 : vector<256x32xi1>, vector<256x32xf32>
    %c1 = arith.constant 1 : index
    %c0_19 = arith.constant 0 : index
    %40 = vector.load %arg7[%c1, %c0_19] : memref<296x32xf32, #tpu.memory_space<vmem>>, vector<256x32xf32>
    %c2 = arith.constant 2 : index
    %c0_20 = arith.constant 0 : index
    %41 = vector.load %arg7[%c2, %c0_20] : memref<296x32xf32, #tpu.memory_space<vmem>>, vector<256x32xf32>
    %cst_21 = arith.constant 0.000000e+00 : f32
    %42 = vector.broadcast %cst_21 : f32 to vector<256x32xf32>
    %43 = arith.select %36, %41, %42 : vector<256x32xi1>, vector<256x32xf32>
    %c16 = arith.constant 16 : index
    %c0_22 = arith.constant 0 : index
    %44 = vector.load %arg7[%c16, %c0_22] : memref<296x32xf32, #tpu.memory_space<vmem>>, vector<256x32xf32>
    %cst_23 = arith.constant 0.000000e+00 : f32
    %45 = vector.broadcast %cst_23 : f32 to vector<256x32xf32>
    %46 = arith.select %34, %44, %45 : vector<256x32xi1>, vector<256x32xf32>
    %c17_24 = arith.constant 17 : index
    %c0_25 = arith.constant 0 : index
    %47 = vector.load %arg7[%c17_24, %c0_25] : memref<296x32xf32, #tpu.memory_space<vmem>>, vector<256x32xf32>
    %c18 = arith.constant 18 : index
    %c0_26 = arith.constant 0 : index
    %48 = vector.load %arg7[%c18, %c0_26] : memref<296x32xf32, #tpu.memory_space<vmem>>, vector<256x32xf32>
    %cst_27 = arith.constant 0.000000e+00 : f32
    %49 = vector.broadcast %cst_27 : f32 to vector<256x32xf32>
    %50 = arith.select %36, %48, %49 : vector<256x32xi1>, vector<256x32xf32>
    %c32 = arith.constant 32 : index
    %c0_28 = arith.constant 0 : index
    %51 = vector.load %arg7[%c32, %c0_28] : memref<296x32xf32, #tpu.memory_space<vmem>>, vector<256x32xf32>
    %cst_29 = arith.constant 0.000000e+00 : f32
    %52 = vector.broadcast %cst_29 : f32 to vector<256x32xf32>
    %53 = arith.select %34, %51, %52 : vector<256x32xi1>, vector<256x32xf32>
    %c33 = arith.constant 33 : index
    %c0_30 = arith.constant 0 : index
    %54 = vector.load %arg7[%c33, %c0_30] : memref<296x32xf32, #tpu.memory_space<vmem>>, vector<256x32xf32>
    %c34 = arith.constant 34 : index
    %c0_31 = arith.constant 0 : index
    %55 = vector.load %arg7[%c34, %c0_31] : memref<296x32xf32, #tpu.memory_space<vmem>>, vector<256x32xf32>
    %cst_32 = arith.constant 0.000000e+00 : f32
    %56 = vector.broadcast %cst_32 : f32 to vector<256x32xf32>
    %57 = arith.select %36, %55, %56 : vector<256x32xi1>, vector<256x32xf32>
    %58 = tpu.concatenate %39, %40, %43, %46, %47, %50, %53, %54, %57 in 1 : vector<256x32xf32>, vector<256x32xf32>, vector<256x32xf32>, vector<256x32xf32>, vector<256x32xf32>, vector<256x32xf32>, vector<256x32xf32>, vector<256x32xf32>, vector<256x32xf32> -> vector<256x288xf32>
    %59 = arith.truncf %58 : vector<256x288xf32> to vector<256x288xbf16>
    %c0_33 = arith.constant 0 : index
    %c0_34 = arith.constant 0 : index
    %60 = vector.load %arg4[%c0_33, %c0_34] : memref<288x64xbf16, #tpu.memory_space<vmem>>, vector<288x64xbf16>
    %cst_35 = arith.constant dense<0.000000e+00> : vector<256x64xf32>
    %61 = tpu.matmul %59, %60, %cst_35 {dimension_numbers = #tpu.dot_dimension_numbers<[1], [0], [0], [1], [0, 0, 1, 1], [], []>} : vector<256x288xbf16>, vector<288x64xbf16>, vector<256x64xf32> -> vector<256x64xf32>
    %c0_36 = arith.constant 0 : index
    %c0_37 = arith.constant 0 : index
    %62 = vector.load %arg5[%c0_36, %c0_37] : memref<1x64xf32, #tpu.memory_space<vmem>>, vector<1x64xf32>
    %63 = vector.broadcast %62 : vector<1x64xf32> to vector<256x64xf32>
    %64 = arith.addf %61, %63 : vector<256x64xf32>
    %cst_38 = arith.constant 0.000000e+00 : f32
    %65 = vector.broadcast %cst_38 : f32 to vector<256x64xf32>
    %66 = arith.cmpf ogt, %64, %65 : vector<256x64xf32>
    %cst_39 = arith.constant 1.000000e-01 : f32
    %67 = vector.broadcast %cst_39 : f32 to vector<256x64xf32>
    %68 = arith.mulf %67, %64 : vector<256x64xf32>
    %69 = arith.select %66, %64, %68 : vector<256x64xi1>, vector<256x64xf32>
    %70 = arith.addf %69, %1 : vector<256x64xf32>
    %c0_40 = arith.constant 0 : index
    %c0_41 = arith.constant 0 : index
    %c0_42 = arith.constant 0 : index
    %71 = vector.load %arg6[%c0_40, %c0_41, %c0_42] : memref<1x256x64xf32, #tpu.memory_space<vmem>>, vector<1x256x64xf32>
    %72 = vector.shape_cast %71 : vector<1x256x64xf32> to vector<256x64xf32>
    %73 = vector.shape_cast %70 : vector<256x64xf32> to vector<1x256x64xf32>
    tpu.vector_store %arg6[%c0_40, %c0_41, %c0_42], %73 {strides = array<i32>} : memref<1x256x64xf32, #tpu.memory_space<vmem>>, vector<1x256x64xf32>,
    return
  }
  func.func @transform_0(%arg0: i32) -> (i32, i32, i32) {
    %c0_i32 = arith.constant 0 : i32
    %c0_i32_0 = arith.constant 0 : i32
    %c0_i32_1 = arith.constant 0 : i32
    return %arg0, %c0_i32, %c0_i32_0 : i32, i32, i32
  }
  func.func @transform_1(%arg0: i32) -> (i32, i32) {
    %c0_i32 = arith.constant 0 : i32
    %c0_i32_0 = arith.constant 0 : i32
    %c0_i32_1 = arith.constant 0 : i32
    return %c0_i32, %c0_i32_0 : i32, i32
  }
  func.func @transform_2(%arg0: i32) -> (i32, i32) {
    %c0_i32 = arith.constant 0 : i32
    %c0_i32_0 = arith.constant 0 : i32
    %c0_i32_1 = arith.constant 0 : i32
    return %c0_i32, %c0_i32_0 : i32, i32
  }
  func.func @transform_3(%arg0: i32) -> (i32, i32) {
    %c0_i32 = arith.constant 0 : i32
    %c0_i32_0 = arith.constant 0 : i32
    %c0_i32_1 = arith.constant 0 : i32
    return %c0_i32, %c0_i32_0 : i32, i32
  }
  func.func @transform_4(%arg0: i32) -> (i32, i32) {
    %c0_i32 = arith.constant 0 : i32
    %c0_i32_0 = arith.constant 0 : i32
    %c0_i32_1 = arith.constant 0 : i32
    return %c0_i32, %c0_i32_0 : i32, i32
  }
  func.func @transform_5(%arg0: i32) -> (i32, i32, i32) {
    %c0_i32 = arith.constant 0 : i32
    %c0_i32_0 = arith.constant 0 : i32
    %c0_i32_1 = arith.constant 0 : i32
    return %arg0, %c0_i32, %c0_i32_0 : i32, i32, i32
  }
}

</mosaic_0001>

<llo_original>
// kernel: tpu_custom_call.1
$region0: #{tpu_custom_call.1}
  #allocation0 [shape = 'u32[]', space=smem, size = 0x4, offset = 0x4, fixed_abs, tag = 'smem constant byte address 0x4 - core index']
  #allocation1 [shape = 'u32[144,128]{1,0:T(1,128)}', space=vmem, size = 0x12000, scoped, tag = 'internal scratch']
  #allocation2 [shape = 'f32[296,32]{1,0:T(8,128)}', space=vmem, size = 0x25000, scoped, tag = 'scratch operand']
  %s0 = inlined_call_operand.vmem [shape: f32[2,256,64], index: 0, kind: input, shape index: {}]
  %s1 = inlined_call_operand.vmem [shape: bf16[64,32], index: 1, kind: input, shape index: {}]
  %s2 = inlined_call_operand.vmem [shape: f32[1,32], index: 2, kind: input, shape index: {}]
  %s3 = inlined_call_operand.vmem [shape: bf16[288,64], index: 3, kind: input, shape index: {}]
  %s4 = inlined_call_operand.vmem [shape: f32[1,64], index: 4, kind: input, shape index: {}]
  %s5 = inlined_call_operand.vmem [shape: f32[2,256,64], index: 5, kind: output, shape index: {}]
  %s6 = sld [smem:[#allocation0]]
  $region53: #{tpu_custom_call.1} parent=0
    _
  %s8 = ssub.s32 1, %s6
  %s9 = scalar_select 0, %s8, %s6
  loop: start=0, step=1, limit=4
  $region2: #{tpu_custom_call.1} parent=0 // loop_pre_header
    _
  $region3: #{tpu_custom_call.1} parent=0 // loop_header
    %s11 = sphi 0, %s15
    %p12 = scmp.ge.s32.totalorder %s11, 4
    %s21 = sphi 0, %s23
    %s24 = sphi 0, %s21
    %s25 = sphi 0, %s24
    %s41 = sphi 0, %s25
    %s45 = sphi 0, %s45
    %s47 = sphi 0, %s45
    %s48 = sphi 0, %s47
    %s62 = sphi 0, %s48
    %s66 = sphi 0, %s66
    %s68 = sphi 0, %s66
    %s69 = sphi 0, %s68
    %s83 = sphi 0, %s69
    %s87 = sphi 0, %s87
    %s89 = sphi 0, %s87
    %s90 = sphi 0, %s89
    %s104 = sphi 0, %s90
    %s108 = sphi 0, %s108
    %s110 = sphi 0, %s108
    %s111 = sphi 0, %s110
    %s125 = sphi 0, %s111
    %s131 = sphi 0, %s133
    %s134 = sphi 0, %s131
    %s135 = sphi 0, %s134
    %s151 = sphi 0, %s135
  $region4: #{tpu_custom_call.1} parent=0 // loop_header_branch
    %14 = sbr.rel (%p12) target = $region8
  $region5: #{tpu_custom_call.1} parent=0 // loop_body
    %s16 = ssub.s32 %s11, 1
    %s17 = ssub.s32 %s11, 2
    %s18 = sadd.s32 %s11, 1
    %s19 = ssub.s32 %s11, %s18
    %p20 = scmp.eq.s32.totalorder %s19, 0
    %s22 = sadd.s32 %s21, 1
    %s23 = scalar_select %p20, %s21, %s22
    %p26 = pneg %p20
    %p27 = scmp.eq.s32.totalorder %s11, 1
    %p28 = por %p26, %p27
    %p29 = scmp.ne.s32.totalorder %s21, %s24
    %p30 = scmp.eq.s32.totalorder %s11, 0
    %p31 = por %p29, %p30
    %p32 = scmp.ne.s32.totalorder %s21, %s24
    %p33 = scmp.eq.s32.totalorder %s16, 1
    %p34 = por %p32, %p33
    %p35 = scmp.ne.s32.totalorder %s24, %s25
    %p36 = scmp.eq.s32.totalorder %s16, 0
    %p37 = por %p35, %p36
    %p38 = scmp.ne.s32.totalorder %s24, %s25
    %p39 = scmp.eq.s32.totalorder %s17, 1
    %p40 = por %p38, %p39
    %p42 = scmp.ne.s32.totalorder %s25, %s41
    %p43 = scmp.eq.s32.totalorder %s17, 0
    %p44 = por %p42, %p43
    %s46 = sadd.s32 %s45, 1
    %p49 = scmp.eq.s32.totalorder %s11, 1
    %p50 = scmp.ne.s32.totalorder %s45, %s47
    %p51 = scmp.eq.s32.totalorder %s11, 0
    %p52 = por %p50, %p51
    %p53 = scmp.ne.s32.totalorder %s45, %s47
    %p54 = scmp.eq.s32.totalorder %s16, 1
    %p55 = por %p53, %p54
    %p56 = scmp.ne.s32.totalorder %s47, %s48
    %p57 = scmp.eq.s32.totalorder %s16, 0
    %p58 = por %p56, %p57
    %p59 = scmp.ne.s32.totalorder %s47, %s48
    %p60 = scmp.eq.s32.totalorder %s17, 1
    %p61 = por %p59, %p60
    %p63 = scmp.ne.s32.totalorder %s48, %s62
    %p64 = scmp.eq.s32.totalorder %s17, 0
    %p65 = por %p63, %p64
    %s67 = sadd.s32 %s66, 1
    %p70 = scmp.eq.s32.totalorder %s11, 1
    %p71 = scmp.ne.s32.totalorder %s66, %s68
    %p72 = scmp.eq.s32.totalorder %s11, 0
    %p73 = por %p71, %p72
    %p74 = scmp.ne.s32.totalorder %s66, %s68
    %p75 = scmp.eq.s32.totalorder %s16, 1
    %p76 = por %p74, %p75
    %p77 = scmp.ne.s32.totalorder %s68, %s69
    %p78 = scmp.eq.s32.totalorder %s16, 0
    %p79 = por %p77, %p78
    %p80 = scmp.ne.s32.totalorder %s68, %s69
    %p81 = scmp.eq.s32.totalorder %s17, 1
    %p82 = por %p80, %p81
    %p84 = scmp.ne.s32.totalorder %s69, %s83
    %p85 = scmp.eq.s32.totalorder %s17, 0
    %p86 = por %p84, %p85
    %s88 = sadd.s32 %s87, 1
    %p91 = scmp.eq.s32.totalorder %s11, 1
    %p92 = scmp.ne.s32.totalorder %s87, %s89
    %p93 = scmp.eq.s32.totalorder %s11, 0
    %p94 = por %p92, %p93
    %p95 = scmp.ne.s32.totalorder %s87, %s89
    %p96 = scmp.eq.s32.totalorder %s16, 1
    %p97 = por %p95, %p96
    %p98 = scmp.ne.s32.totalorder %s89, %s90
    %p99 = scmp.eq.s32.totalorder %s16, 0
    %p100 = por %p98, %p99
    %p101 = scmp.ne.s32.totalorder %s89, %s90
    %p102 = scmp.eq.s32.totalorder %s17, 1
    %p103 = por %p101, %p102
    %p105 = scmp.ne.s32.totalorder %s90, %s104
    %p106 = scmp.eq.s32.totalorder %s17, 0
    %p107 = por %p105, %p106
    %s109 = sadd.s32 %s108, 1
    %p112 = scmp.eq.s32.totalorder %s11, 1
    %p113 = scmp.ne.s32.totalorder %s108, %s110
    %p114 = scmp.eq.s32.totalorder %s11, 0
    %p115 = por %p113, %p114
    %p116 = scmp.ne.s32.totalorder %s108, %s110
    %p117 = scmp.eq.s32.totalorder %s16, 1
    %p118 = por %p116, %p117
    %p119 = scmp.ne.s32.totalorder %s110, %s111
    %p120 = scmp.eq.s32.totalorder %s16, 0
    %p121 = por %p119, %p120
    %p122 = scmp.ne.s32.totalorder %s110, %s111
    %p123 = scmp.eq.s32.totalorder %s17, 1
    %p124 = por %p122, %p123
    %p126 = scmp.ne.s32.totalorder %s111, %s125
    %p127 = scmp.eq.s32.totalorder %s17, 0
    %p128 = por %p126, %p127
    %s129 = ssub.s32 %s11, %s18
    %p130 = scmp.eq.s32.totalorder %s129, 0
    %s132 = sadd.s32 %s131, 1
    %s133 = scalar_select %p130, %s131, %s132
    %p136 = pneg %p130
    %p137 = scmp.eq.s32.totalorder %s11, 1
    %p138 = por %p136, %p137
    %p139 = scmp.ne.s32.totalorder %s131, %s134
    %p140 = scmp.eq.s32.totalorder %s11, 0
    %p141 = por %p139, %p140
    %p142 = scmp.ne.s32.totalorder %s131, %s134
    %p143 = scmp.eq.s32.totalorder %s16, 1
    %p144 = por %p142, %p143
    %p145 = scmp.ne.s32.totalorder %s134, %s135
    %p146 = scmp.eq.s32.totalorder %s16, 0
    %p147 = por %p145, %p146
    %p148 = scmp.ne.s32.totalorder %s134, %s135
    %p149 = scmp.eq.s32.totalorder %s17, 1
    %p150 = por %p148, %p149
    %p152 = scmp.ne.s32.totalorder %s135, %s151
    %p153 = scmp.eq.s32.totalorder %s17, 0
    %p154 = por %p152, %p153
    %p155 = scmp.le.s32.totalorder 1, %s11
    %p156 = scmp.lt.s32.totalorder %s11, 3
    %p157 = pnand %p155, %p156
    %p158 = pneg %p157
    // Predicated region
    $region9: #{tpu_custom_call.1} parent=5 // pred_check
      _
    $region10: #{tpu_custom_call.1} parent=5 // pred_check_branch
      %160 = sbr.rel (%p157) target = $region12
    $region11: #{tpu_custom_call.1} parent=5 // pred_region
      %s161 = ssub.s32 %s11, 1
      // Predicated region
      $region13: #{tpu_custom_call.1} parent=11 // pred_check
        %p162 = pneg %p58
      $region14: #{tpu_custom_call.1} parent=11 // pred_check_branch
        %164 = sbr.rel (%p162) target = $region16
      $region15: #{tpu_custom_call.1} parent=11 // pred_region
        _
      $region16: #{tpu_custom_call.1} parent=11 // pred_fallthru
        _
      // Predicated region
      $region17: #{tpu_custom_call.1} parent=11 // pred_check
        %p165 = pneg %p79
      $region18: #{tpu_custom_call.1} parent=11 // pred_check_branch
        %167 = sbr.rel (%p165) target = $region20
      $region19: #{tpu_custom_call.1} parent=11 // pred_region
        _
      $region20: #{tpu_custom_call.1} parent=11 // pred_fallthru
        _
      // Predicated region
      $region21: #{tpu_custom_call.1} parent=11 // pred_check
        %p168 = pneg %p100
      $region22: #{tpu_custom_call.1} parent=11 // pred_check_branch
        %170 = sbr.rel (%p168) target = $region24
      $region23: #{tpu_custom_call.1} parent=11 // pred_region
        _
      $region24: #{tpu_custom_call.1} parent=11 // pred_fallthru
        _
      // Predicated region
      $region25: #{tpu_custom_call.1} parent=11 // pred_check
        %p171 = pneg %p121
      $region26: #{tpu_custom_call.1} parent=11 // pred_check_branch
        %173 = sbr.rel (%p171) target = $region28
      $region27: #{tpu_custom_call.1} parent=11 // pred_region
        _
      $region28: #{tpu_custom_call.1} parent=11 // pred_fallthru
        _
    $region12: #{tpu_custom_call.1} parent=5 // pred_fallthru
      _
    %p174 = scmp.lt.s32.totalorder %s11, 2
    // Predicated region
    $region29: #{tpu_custom_call.1} parent=5 // pred_check
      %p175 = pneg %p174
    $region30: #{tpu_custom_call.1} parent=5 // pred_check_branch
      %177 = sbr.rel (%p175) target = $region32
    $region31: #{tpu_custom_call.1} parent=5 // pred_region
      // Predicated region
      $region33: #{tpu_custom_call.1} parent=31 // pred_check
        %p178 = pneg %p31
      $region34: #{tpu_custom_call.1} parent=31 // pred_check_branch
        %180 = sbr.rel (%p178) target = $region36
      $region35: #{tpu_custom_call.1} parent=31 // pred_region
        %p181 = scmp.lt.s32.totalorder %s11, 1
        %s182 = scalar_select %p181, %s11, 1
        %s183 = smul.addr %s182, 32
        %s184 = smul.addr %s183, 8
        %s185 = scalar_lea.vmem %s0, %s184
      $region36: #{tpu_custom_call.1} parent=31 // pred_fallthru
        _
    $region32: #{tpu_custom_call.1} parent=5 // pred_fallthru
      _
    %p186 = scmp.le.s32.totalorder 1, %s11
    %p187 = scmp.lt.s32.totalorder %s11, 3
    %p188 = pnand %p186, %p187
    %p189 = pneg %p188
    // Predicated region
    $region37: #{tpu_custom_call.1} parent=5 // pred_check
      _
    $region38: #{tpu_custom_call.1} parent=5 // pred_check_branch
      %191 = sbr.rel (%p188) target = $region40
    $region39: #{tpu_custom_call.1} parent=5 // pred_region
      %s192 = ssub.s32 %s11, 1
      %p193 = scmp.lt.s32.totalorder %s16, 1
      %s194 = scalar_select %p193, %s16, 1
      %s195 = smul.addr %s194, 32
      %s196 = smul.addr %s195, 8
      %s197 = scalar_lea.vmem %s0, %s196
      %p198 = pneg %p37
      %p199 = pneg %p34
      %p200 = pneg %p58
      %p201 = pneg %p55
      %p202 = pneg %p79
      %p203 = pneg %p76
      %p204 = pneg %p100
      %p205 = pneg %p97
      %p206 = pneg %p121
      %p207 = pneg %p118
      %p208 = pneg %p147
      %p209 = pneg %p144
      %p210 = scmp.lt.s32.totalorder %s16, 1
      %s211 = scalar_select %p210, %s16, 1
      %s212 = smul.addr %s211, 32
      %s213 = smul.addr %s212, 8
      %s214 = scalar_lea.vmem %s5, %s213
      %p215 = scmp.lt.s32.totalorder %s16, 1
      %s216 = scalar_select %p215, %s16, 1
      %s217 = smul.addr %s216, 32
      %s218 = smul.addr %s217, 8
      %s219 = scalar_lea.vmem %s0, %s218
      %p220 = scmp.lt.s32.totalorder %s16, 1
      %s221 = scalar_select %p220, %s16, 1
      %s222 = smul.addr %s221, 32
      %s223 = smul.addr %s222, 8
      %s224 = scalar_lea.vmem %s5, %s223
      %v226 = vld [vmem:[%s219] sm:$0xff]
      %v227 = vld [vmem:[%s219 + $0x8] sm:$0xff]
      %v228 = vld [vmem:[%s219 + $0x10] sm:$0xff]
      %v229 = vld [vmem:[%s219 + $0x18] sm:$0xff]
      %v230 = vld [vmem:[%s219 + $0x20] sm:$0xff]
      %v231 = vld [vmem:[%s219 + $0x28] sm:$0xff]
      %v232 = vld [vmem:[%s219 + $0x30] sm:$0xff]
      %v233 = vld [vmem:[%s219 + $0x38] sm:$0xff]
      %v234 = vld [vmem:[%s219 + $0x40] sm:$0xff]
      %v235 = vld [vmem:[%s219 + $0x48] sm:$0xff]
      %v236 = vld [vmem:[%s219 + $0x50] sm:$0xff]
      %v237 = vld [vmem:[%s219 + $0x58] sm:$0xff]
      %v238 = vld [vmem:[%s219 + $0x60] sm:$0xff]
      %v239 = vld [vmem:[%s219 + $0x68] sm:$0xff]
      %v240 = vld [vmem:[%s219 + $0x70] sm:$0xff]
      %v241 = vld [vmem:[%s219 + $0x78] sm:$0xff]
      %v242 = vld [vmem:[%s219 + $0x80] sm:$0xff]
      %v243 = vld [vmem:[%s219 + $0x88] sm:$0xff]
      %v244 = vld [vmem:[%s219 + $0x90] sm:$0xff]
      %v245 = vld [vmem:[%s219 + $0x98] sm:$0xff]
      %v246 = vld [vmem:[%s219 + $0xa0] sm:$0xff]
      %v247 = vld [vmem:[%s219 + $0xa8] sm:$0xff]
      %v248 = vld [vmem:[%s219 + $0xb0] sm:$0xff]
      %v249 = vld [vmem:[%s219 + $0xb8] sm:$0xff]
      %v250 = vld [vmem:[%s219 + $0xc0] sm:$0xff]
      %v251 = vld [vmem:[%s219 + $0xc8] sm:$0xff]
      %v252 = vld [vmem:[%s219 + $0xd0] sm:$0xff]
      %v253 = vld [vmem:[%s219 + $0xd8] sm:$0xff]
      %v254 = vld [vmem:[%s219 + $0xe0] sm:$0xff]
      %v255 = vld [vmem:[%s219 + $0xe8] sm:$0xff]
      %v256 = vld [vmem:[%s219 + $0xf0] sm:$0xff]
      %v257 = vld [vmem:[%s219 + $0xf8] sm:$0xff]
      %v258 = vpack.c.bf16 %v227, %v226
      %v259 = vpack.c.bf16 %v229, %v228
      %v260 = vpack.c.bf16 %v231, %v230
      %v261 = vpack.c.bf16 %v233, %v232
      %v262 = vpack.c.bf16 %v235, %v234
      %v263 = vpack.c.bf16 %v237, %v236
      %v264 = vpack.c.bf16 %v239, %v238
      %v265 = vpack.c.bf16 %v241, %v240
      %v266 = vpack.c.bf16 %v243, %v242
      %v267 = vpack.c.bf16 %v245, %v244
      %v268 = vpack.c.bf16 %v247, %v246
      %v269 = vpack.c.bf16 %v249, %v248
      %v270 = vpack.c.bf16 %v251, %v250
      %v271 = vpack.c.bf16 %v253, %v252
      %v272 = vpack.c.bf16 %v255, %v254
      %v273 = vpack.c.bf16 %v257, %v256
      %v274 = vld [vmem:[%s1] sm:$0xf]
      %v275 = vld [vmem:[%s1 + $0x4] sm:$0xf]
      %v276 = vld [vmem:[%s1 + $0x8] sm:$0xf]
      %v277 = vld [vmem:[%s1 + $0xc] sm:$0xf]
      %v278 = vld [vmem:[%s1 + $0x10] sm:$0xf]
      %v279 = vld [vmem:[%s1 + $0x14] sm:$0xf]
      %v280 = vld [vmem:[%s1 + $0x18] sm:$0xf]
      %v281 = vld [vmem:[%s1 + $0x1c] sm:$0xf]
      %v282 = vld [vmem:[%s2] sm:$0x1]
      %v284 = vlaneseq
      %v285 = vshrl.u32 %v284, 7
      %v286 = vsub.s32 0, %v285
      %v287 = vrot.slane %v282, %v286
      %v297 = vunpack.c.l.b16 %v274
      %v298 = vunpack.c.l.b16 %v275
      %v299 = vunpack.c.l.b16 %v276
      %v300 = vunpack.c.l.b16 %v277
      %v301 = vunpack.c.l.b16 %v278
      %v302 = vunpack.c.l.b16 %v279
      %v303 = vunpack.c.l.b16 %v280
      %v304 = vunpack.c.l.b16 %v281
      %v305 = vpack.c.b16 %v298, %v297
      %v306 = vpack.c.b16 %v300, %v299
      %v307 = vpack.c.b16 %v302, %v301
      %v308 = vpack.c.b16 %v304, %v303
      %vm313 = vcmask 523264
      %v315 = vsel %vm313, %v258, 0
      %v318 = vsel %vm313, %v259, 0
      %v321 = vsel %vm313, %v260, 0
      %v324 = vsel %vm313, %v261, 0
      %v327 = vsel %vm313, %v262, 0
      %v330 = vsel %vm313, %v263, 0
      %v333 = vsel %vm313, %v264, 0
      %v336 = vsel %vm313, %v265, 0
      %v339 = vsel %vm313, %v266, 0
      %v342 = vsel %vm313, %v267, 0
      %v345 = vsel %vm313, %v268, 0
      %v348 = vsel %vm313, %v269, 0
      %v351 = vsel %vm313, %v270, 0
      %v354 = vsel %vm313, %v271, 0
      %v357 = vsel %vm313, %v272, 0
      %v360 = vsel %vm313, %v273, 0
      %362 = vmatprep.subr.bf16.mxu0 0
      %363 = vmatpush1.bf16.msra.mxu0 %v305
      %364 = vmatprep.subr.bf16.mxu0 0
      %365 = vmatpush1.bf16.msra.mxu0 %v306
      %366 = vmatprep.subr.bf16.mxu0 0
      %367 = vmatpush1.bf16.msra.mxu0 %v307
      %368 = vmatprep.subr.bf16.mxu0 0
      %369 = vmatpush1.bf16.msra.mxu0 %v308
      %370 = vmatprep.subr.bf16.mxu0 0
      %371 = vmatpush1.bf16.msra.mxu0 0
      %372 = vmatprep.subr.bf16.mxu0 0
      %373 = vmatpush1.bf16.msra.mxu0 0
      %374 = vmatprep.subr.bf16.mxu0 0
      %375 = vmatpush1.bf16.msra.mxu0 0
      %376 = vmatprep.subr.bf16.mxu0 0
      %377 = vmatpush1.bf16.msra.mxu0 0
      %378 = vmatprep.subr.bf16.mxu0 0
      %379 = vmatpush1.bf16.msra.mxu0 0
      %380 = vmatprep.subr.bf16.mxu0 0
      %381 = vmatpush1.bf16.msra.mxu0 0
      %382 = vmatprep.subr.bf16.mxu0 0
      %383 = vmatpush1.bf16.msra.mxu0 0
      %384 = vmatprep.subr.bf16.mxu0 0
      %385 = vmatpush1.bf16.msra.mxu0 0
      %386 = vmatprep.subr.bf16.mxu0 0
      %387 = vmatpush1.bf16.msra.mxu0 0
      %388 = vmatprep.subr.bf16.mxu0 0
      %389 = vmatpush1.bf16.msra.mxu0 0
      %390 = vmatprep.subr.bf16.mxu0 0
      %391 = vmatpush1.bf16.msra.mxu0 0
      %392 = vmatprep.subr.bf16.mxu0 0
      %393 = vmatpush1.bf16.msra.mxu0 0
      %394 = vmatprep.mubr.bf16.mxu0 0
      %395 = vmatmul.mubr.bf16.gmra.mrb[0].mxu0 %v315
      %v396 = vpop.f32.mrb[0].mxu0
      %v397 = vadd.f32 %v287, %v396
      %v398 = vpop.f32.mrb[0].mxu0
      %v399 = vpop.f32.mrb[0].mxu0
      %v400 = vadd.f32 %v287, %v399
      %v401 = vpop.f32.mrb[0].mxu0
      %402 = vmatprep.mubr.bf16.mxu0 0
      %403 = vmatmul.mubr.bf16.gmra.mrb[0].mxu0 %v318
      %v404 = vpop.f32.mrb[0].mxu0
      %v405 = vadd.f32 %v287, %v404
      %v406 = vpop.f32.mrb[0].mxu0
      %v407 = vpop.f32.mrb[0].mxu0
      %v408 = vadd.f32 %v287, %v407
      %v409 = vpop.f32.mrb[0].mxu0
      %410 = vmatprep.mubr.bf16.mxu0 0
      %411 = vmatmul.mubr.bf16.gmra.mrb[0].mxu0 %v321
      %v412 = vpop.f32.mrb[0].mxu0
      %v413 = vadd.f32 %v287, %v412
      %v414 = vpop.f32.mrb[0].mxu0
      %v415 = vpop.f32.mrb[0].mxu0
      %v416 = vadd.f32 %v287, %v415
      %v417 = vpop.f32.mrb[0].mxu0
      %418 = vmatprep.mubr.bf16.mxu0 0
      %419 = vmatmul.mubr.bf16.gmra.mrb[0].mxu0 %v324
      %v420 = vpop.f32.mrb[0].mxu0
      %v421 = vadd.f32 %v287, %v420
      %v422 = vpop.f32.mrb[0].mxu0
      %v423 = vpop.f32.mrb[0].mxu0
      %v424 = vadd.f32 %v287, %v423
      %v425 = vpop.f32.mrb[0].mxu0
      %426 = vmatprep.mubr.bf16.mxu0 0
      %427 = vmatmul.mubr.bf16.gmra.mrb[0].mxu0 %v327
      %v428 = vpop.f32.mrb[0].mxu0
      %v429 = vadd.f32 %v287, %v428
      %v430 = vpop.f32.mrb[0].mxu0
      %v431 = vpop.f32.mrb[0].mxu0
      %v432 = vadd.f32 %v287, %v431
      %v433 = vpop.f32.mrb[0].mxu0
      %434 = vmatprep.mubr.bf16.mxu0 0
      %435 = vmatmul.mubr.bf16.gmra.mrb[0].mxu0 %v330
      %v436 = vpop.f32.mrb[0].mxu0
      %v437 = vadd.f32 %v287, %v436
      %v438 = vpop.f32.mrb[0].mxu0
      %v439 = vpop.f32.mrb[0].mxu0
      %v440 = vadd.f32 %v287, %v439
      %v441 = vpop.f32.mrb[0].mxu0
      %442 = vmatprep.mubr.bf16.mxu0 0
      %443 = vmatmul.mubr.bf16.gmra.mrb[0].mxu0 %v333
      %v444 = vpop.f32.mrb[0].mxu0
      %v445 = vadd.f32 %v287, %v444
      %v446 = vpop.f32.mrb[0].mxu0
      %v447 = vpop.f32.mrb[0].mxu0
      %v448 = vadd.f32 %v287, %v447
      %v449 = vpop.f32.mrb[0].mxu0
      %450 = vmatprep.mubr.bf16.mxu0 0
      %451 = vmatmul.mubr.bf16.gmra.mrb[0].mxu0 %v336
      %v452 = vpop.f32.mrb[0].mxu0
      %v453 = vadd.f32 %v287, %v452
      %v454 = vpop.f32.mrb[0].mxu0
      %v455 = vpop.f32.mrb[0].mxu0
      %v456 = vadd.f32 %v287, %v455
      %v457 = vpop.f32.mrb[0].mxu0
      %458 = vmatprep.mubr.bf16.mxu0 0
      %459 = vmatmul.mubr.bf16.gmra.mrb[0].mxu0 %v339
      %v460 = vpop.f32.mrb[0].mxu0
      %v461 = vadd.f32 %v287, %v460
      %v462 = vpop.f32.mrb[0].mxu0
      %v463 = vpop.f32.mrb[0].mxu0
      %v464 = vadd.f32 %v287, %v463
      %v465 = vpop.f32.mrb[0].mxu0
      %466 = vmatprep.mubr.bf16.mxu0 0
      %467 = vmatmul.mubr.bf16.gmra.mrb[0].mxu0 %v342
      %v468 = vpop.f32.mrb[0].mxu0
      %v469 = vadd.f32 %v287, %v468
      %v470 = vpop.f32.mrb[0].mxu0
      %v471 = vpop.f32.mrb[0].mxu0
      %v472 = vadd.f32 %v287, %v471
      %v473 = vpop.f32.mrb[0].mxu0
      %474 = vmatprep.mubr.bf16.mxu0 0
      %475 = vmatmul.mubr.bf16.gmra.mrb[0].mxu0 %v345
      %v476 = vpop.f32.mrb[0].mxu0
      %v477 = vadd.f32 %v287, %v476
      %v478 = vpop.f32.mrb[0].mxu0
      %v479 = vpop.f32.mrb[0].mxu0
      %v480 = vadd.f32 %v287, %v479
      %v481 = vpop.f32.mrb[0].mxu0
      %482 = vmatprep.mubr.bf16.mxu0 0
      %483 = vmatmul.mubr.bf16.gmra.mrb[0].mxu0 %v348
      %v484 = vpop.f32.mrb[0].mxu0
      %v485 = vadd.f32 %v287, %v484
      %v486 = vpop.f32.mrb[0].mxu0
      %v487 = vpop.f32.mrb[0].mxu0
      %v488 = vadd.f32 %v287, %v487
      %v489 = vpop.f32.mrb[0].mxu0
      %490 = vmatprep.mubr.bf16.mxu0 0
      %491 = vmatmul.mubr.bf16.gmra.mrb[0].mxu0 %v351
      %v492 = vpop.f32.mrb[0].mxu0
      %v493 = vadd.f32 %v287, %v492
      %v494 = vpop.f32.mrb[0].mxu0
      %v495 = vpop.f32.mrb[0].mxu0
      %v496 = vadd.f32 %v287, %v495
      %v497 = vpop.f32.mrb[0].mxu0
      %498 = vmatprep.mubr.bf16.mxu0 0
      %499 = vmatmul.mubr.bf16.gmra.mrb[0].mxu0 %v354
      %v500 = vpop.f32.mrb[0].mxu0
      %v501 = vadd.f32 %v287, %v500
      %v502 = vpop.f32.mrb[0].mxu0
      %v503 = vpop.f32.mrb[0].mxu0
      %v504 = vadd.f32 %v287, %v503
      %v505 = vpop.f32.mrb[0].mxu0
      %506 = vmatprep.mubr.bf16.mxu0 0
      %507 = vmatmul.mubr.bf16.gmra.mrb[0].mxu0 %v357
      %v508 = vpop.f32.mrb[0].mxu0
      %v509 = vadd.f32 %v287, %v508
      %v510 = vpop.f32.mrb[0].mxu0
      %v511 = vpop.f32.mrb[0].mxu0
      %v512 = vadd.f32 %v287, %v511
      %v513 = vpop.f32.mrb[0].mxu0
      %514 = vmatprep.mubr.bf16.mxu0 0
      %515 = vmatmul.mubr.bf16.gmra.mrb[0].mxu0 %v360
      %v516 = vpop.f32.mrb[0].mxu0
      %v517 = vadd.f32 %v287, %v516
      %v518 = vpop.f32.mrb[0].mxu0
      %v519 = vpop.f32.mrb[0].mxu0
      %v520 = vadd.f32 %v287, %v519
      %v521 = vpop.f32.mrb[0].mxu0
      %522 = vdwg.mxu0
      %vm523 = vcmp.gt.f32.partialorder %v397, 0.0
      %vm524 = vcmp.gt.f32.partialorder %v400, 0.0
      %vm525 = vcmp.gt.f32.partialorder %v405, 0.0
      %vm526 = vcmp.gt.f32.partialorder %v408, 0.0
      %vm527 = vcmp.gt.f32.partialorder %v413, 0.0
      %vm528 = vcmp.gt.f32.partialorder %v416, 0.0
      %vm529 = vcmp.gt.f32.partialorder %v421, 0.0
      %vm530 = vcmp.gt.f32.partialorder %v424, 0.0
      %vm531 = vcmp.gt.f32.partialorder %v429, 0.0
      %vm532 = vcmp.gt.f32.partialorder %v432, 0.0
      %vm533 = vcmp.gt.f32.partialorder %v437, 0.0
      %vm534 = vcmp.gt.f32.partialorder %v440, 0.0
      %vm535 = vcmp.gt.f32.partialorder %v445, 0.0
      %vm536 = vcmp.gt.f32.partialorder %v448, 0.0
      %vm537 = vcmp.gt.f32.partialorder %v453, 0.0
      %vm538 = vcmp.gt.f32.partialorder %v456, 0.0
      %vm539 = vcmp.gt.f32.partialorder %v461, 0.0
      %vm540 = vcmp.gt.f32.partialorder %v464, 0.0
      %vm541 = vcmp.gt.f32.partialorder %v469, 0.0
      %vm542 = vcmp.gt.f32.partialorder %v472, 0.0
      %vm543 = vcmp.gt.f32.partialorder %v477, 0.0
      %vm544 = vcmp.gt.f32.partialorder %v480, 0.0
      %vm545 = vcmp.gt.f32.partialorder %v485, 0.0
      %vm546 = vcmp.gt.f32.partialorder %v488, 0.0
      %vm547 = vcmp.gt.f32.partialorder %v493, 0.0
      %vm548 = vcmp.gt.f32.partialorder %v496, 0.0
      %vm549 = vcmp.gt.f32.partialorder %v501, 0.0
      %vm550 = vcmp.gt.f32.partialorder %v504, 0.0
      %vm551 = vcmp.gt.f32.partialorder %v509, 0.0
      %vm552 = vcmp.gt.f32.partialorder %v512, 0.0
      %vm553 = vcmp.gt.f32.partialorder %v517, 0.0
      %vm554 = vcmp.gt.f32.partialorder %v520, 0.0
      %v555 = vmul.f32 %v397, 0.1
      %v556 = vmul.f32 %v400, 0.1
      %v557 = vmul.f32 %v405, 0.1
      %v558 = vmul.f32 %v408, 0.1
      %v559 = vmul.f32 %v413, 0.1
      %v560 = vmul.f32 %v416, 0.1
      %v561 = vmul.f32 %v421, 0.1
      %v562 = vmul.f32 %v424, 0.1
      %v563 = vmul.f32 %v429, 0.1
      %v564 = vmul.f32 %v432, 0.1
      %v565 = vmul.f32 %v437, 0.1
      %v566 = vmul.f32 %v440, 0.1
      %v567 = vmul.f32 %v445, 0.1
      %v568 = vmul.f32 %v448, 0.1
      %v569 = vmul.f32 %v453, 0.1
      %v570 = vmul.f32 %v456, 0.1
      %v571 = vmul.f32 %v461, 0.1
      %v572 = vmul.f32 %v464, 0.1
      %v573 = vmul.f32 %v469, 0.1
      %v574 = vmul.f32 %v472, 0.1
      %v575 = vmul.f32 %v477, 0.1
      %v576 = vmul.f32 %v480, 0.1
      %v577 = vmul.f32 %v485, 0.1
      %v578 = vmul.f32 %v488, 0.1
      %v579 = vmul.f32 %v493, 0.1
      %v580 = vmul.f32 %v496, 0.1
      %v581 = vmul.f32 %v501, 0.1
      %v582 = vmul.f32 %v504, 0.1
      %v583 = vmul.f32 %v509, 0.1
      %v584 = vmul.f32 %v512, 0.1
      %v585 = vmul.f32 %v517, 0.1
      %v586 = vmul.f32 %v520, 0.1
      %v587 = vsel %vm523, %v397, %v555
      %v588 = vsel %vm524, %v400, %v556
      %v589 = vsel %vm525, %v405, %v557
      %v590 = vsel %vm526, %v408, %v558
      %v591 = vsel %vm527, %v413, %v559
      %v592 = vsel %vm528, %v416, %v560
      %v593 = vsel %vm529, %v421, %v561
      %v594 = vsel %vm530, %v424, %v562
      %v595 = vsel %vm531, %v429, %v563
      %v596 = vsel %vm532, %v432, %v564
      %v597 = vsel %vm533, %v437, %v565
      %v598 = vsel %vm534, %v440, %v566
      %v599 = vsel %vm535, %v445, %v567
      %v600 = vsel %vm536, %v448, %v568
      %v601 = vsel %vm537, %v453, %v569
      %v602 = vsel %vm538, %v456, %v570
      %v603 = vsel %vm539, %v461, %v571
      %v604 = vsel %vm540, %v464, %v572
      %v605 = vsel %vm541, %v469, %v573
      %v606 = vsel %vm542, %v472, %v574
      %v607 = vsel %vm543, %v477, %v575
      %v608 = vsel %vm544, %v480, %v576
      %v609 = vsel %vm545, %v485, %v577
      %v610 = vsel %vm546, %v488, %v578
      %v611 = vsel %vm547, %v493, %v579
      %v612 = vsel %vm548, %v496, %v580
      %v613 = vsel %vm549, %v501, %v581
      %v614 = vsel %vm550, %v504, %v582
      %v615 = vsel %vm551, %v509, %v583
      %v616 = vsel %vm552, %v512, %v584
      %v617 = vsel %vm553, %v517, %v585
      %v618 = vsel %vm554, %v520, %v586
      %vm619 = vcmask 261120
      %620 = vst.msk [vmem:[#allocation2] sm:$0xff] %vm619, 0.0
      %621 = vst.msk [vmem:[#allocation2 + $0x8] sm:$0xff] %vm619, 0.0
      %622 = vst.msk [vmem:[#allocation2 + $0x10] sm:$0xff] %vm619, 0.0
      %623 = vst.msk [vmem:[#allocation2 + $0x18] sm:$0xff] %vm619, 0.0
      %624 = vst.msk [vmem:[#allocation2 + $0x20] sm:$0xff] %vm619, 0.0
      %625 = vst.msk [vmem:[#allocation2 + $0x28] sm:$0xff] %vm619, 0.0
      %626 = vst.msk [vmem:[#allocation2 + $0x30] sm:$0xff] %vm619, 0.0
      %627 = vst.msk [vmem:[#allocation2 + $0x38] sm:$0xff] %vm619, 0.0
      %628 = vst.msk [vmem:[#allocation2 + $0x40] sm:$0xff] %vm619, 0.0
      %629 = vst.msk [vmem:[#allocation2 + $0x48] sm:$0xff] %vm619, 0.0
      %630 = vst.msk [vmem:[#allocation2 + $0x50] sm:$0xff] %vm619, 0.0
      %631 = vst.msk [vmem:[#allocation2 + $0x58] sm:$0xff] %vm619, 0.0
      %632 = vst.msk [vmem:[#allocation2 + $0x60] sm:$0xff] %vm619, 0.0
      %633 = vst.msk [vmem:[#allocation2 + $0x68] sm:$0xff] %vm619, 0.0
      %634 = vst.msk [vmem:[#allocation2 + $0x70] sm:$0xff] %vm619, 0.0
      %635 = vst.msk [vmem:[#allocation2 + $0x78] sm:$0xff] %vm619, 0.0
      %636 = vst.msk [vmem:[#allocation2 + $0x80] sm:$0xff] %vm619, 0.0
      %637 = vst.msk [vmem:[#allocation2 + $0x88] sm:$0xff] %vm619, 0.0
      %638 = vst.msk [vmem:[#allocation2 + $0x90] sm:$0xff] %vm619, 0.0
      %639 = vst.msk [vmem:[#allocation2 + $0x98] sm:$0xff] %vm619, 0.0
      %640 = vst.msk [vmem:[#allocation2 + $0xa0] sm:$0xff] %vm619, 0.0
      %641 = vst.msk [vmem:[#allocation2 + $0xa8] sm:$0xff] %vm619, 0.0
      %642 = vst.msk [vmem:[#allocation2 + $0xb0] sm:$0xff] %vm619, 0.0
      %643 = vst.msk [vmem:[#allocation2 + $0xb8] sm:$0xff] %vm619, 0.0
      %644 = vst.msk [vmem:[#allocation2 + $0xc0] sm:$0xff] %vm619, 0.0
      %645 = vst.msk [vmem:[#allocation2 + $0xc8] sm:$0xff] %vm619, 0.0
      %646 = vst.msk [vmem:[#allocation2 + $0xd0] sm:$0xff] %vm619, 0.0
      %647 = vst.msk [vmem:[#allocation2 + $0xd8] sm:$0xff] %vm619, 0.0
      %648 = vst.msk [vmem:[#allocation2 + $0xe0] sm:$0xff] %vm619, 0.0
      %649 = vst.msk [vmem:[#allocation2 + $0xe8] sm:$0xff] %vm619, 0.0
      %650 = vst.msk [vmem:[#allocation2 + $0xf0] sm:$0xff] %vm619, 0.0
      %651 = vst.msk [vmem:[#allocation2 + $0xf8] sm:$0xff] %vm619, 0.0
      %652 = vst.msk [vmem:[#allocation2 + $0x100] sm:$0xff] %vm619, 0.0
      %653 = vst.msk [vmem:[#allocation2 + $0x108] sm:$0xff] %vm619, 0.0
      %654 = vst.msk [vmem:[#allocation2 + $0x110] sm:$0xff] %vm619, 0.0
      %655 = vst.msk [vmem:[#allocation2 + $0x118] sm:$0xff] %vm619, 0.0
      %656 = vst.msk [vmem:[#allocation2 + $0x120] sm:$0xff] %vm619, 0.0
      %657 = vst.msk [vmem:[#allocation2 + $0x11] sm:$0xff] %vm619, %v587
      %658 = vst.msk [vmem:[#allocation2 + $0x19] sm:$0xff] %vm619, %v588
      %659 = vst.msk [vmem:[#allocation2 + $0x21] sm:$0xff] %vm619, %v589
      %660 = vst.msk [vmem:[#allocation2 + $0x29] sm:$0xff] %vm619, %v590
      %661 = vst.msk [vmem:[#allocation2 + $0x31] sm:$0xff] %vm619, %v591
      %662 = vst.msk [vmem:[#allocation2 + $0x39] sm:$0xff] %vm619, %v592
      %663 = vst.msk [vmem:[#allocation2 + $0x41] sm:$0xff] %vm619, %v593
      %664 = vst.msk [vmem:[#allocation2 + $0x49] sm:$0xff] %vm619, %v594
      %665 = vst.msk [vmem:[#allocation2 + $0x51] sm:$0xff] %vm619, %v595
      %666 = vst.msk [vmem:[#allocation2 + $0x59] sm:$0xff] %vm619, %v596
      %667 = vst.msk [vmem:[#allocation2 + $0x61] sm:$0xff] %vm619, %v597
      %668 = vst.msk [vmem:[#allocation2 + $0x69] sm:$0xff] %vm619, %v598
      %669 = vst.msk [vmem:[#allocation2 + $0x71] sm:$0xff] %vm619, %v599
      %670 = vst.msk [vmem:[#allocation2 + $0x79] sm:$0xff] %vm619, %v600
      %671 = vst.msk [vmem:[#allocation2 + $0x81] sm:$0xff] %vm619, %v601
      %672 = vst.msk [vmem:[#allocation2 + $0x89] sm:$0xff] %vm619, %v602
      %673 = vst.msk [vmem:[#allocation2 + $0x91] sm:$0xff] %vm619, %v603
      %674 = vst.msk [vmem:[#allocation2 + $0x99] sm:$0xff] %vm619, %v604
      %675 = vst.msk [vmem:[#allocation2 + $0xa1] sm:$0xff] %vm619, %v605
      %676 = vst.msk [vmem:[#allocation2 + $0xa9] sm:$0xff] %vm619, %v606
      %677 = vst.msk [vmem:[#allocation2 + $0xb1] sm:$0xff] %vm619, %v607
      %678 = vst.msk [vmem:[#allocation2 + $0xb9] sm:$0xff] %vm619, %v608
      %679 = vst.msk [vmem:[#allocation2 + $0xc1] sm:$0xff] %vm619, %v609
      %680 = vst.msk [vmem:[#allocation2 + $0xc9] sm:$0xff] %vm619, %v610
      %681 = vst.msk [vmem:[#allocation2 + $0xd1] sm:$0xff] %vm619, %v611
      %682 = vst.msk [vmem:[#allocation2 + $0xd9] sm:$0xff] %vm619, %v612
      %683 = vst.msk [vmem:[#allocation2 + $0xe1] sm:$0xff] %vm619, %v613
      %684 = vst.msk [vmem:[#allocation2 + $0xe9] sm:$0xff] %vm619, %v614
      %685 = vst.msk [vmem:[#allocation2 + $0xf1] sm:$0xff] %vm619, %v615
      %686 = vst.msk [vmem:[#allocation2 + $0xf9] sm:$0xff] %vm619, %v616
      %687 = vst.msk [vmem:[#allocation2 + $0x101] sm:$0xff] %vm619, %v617
      %688 = vst.msk [vmem:[#allocation2 + $0x109] sm:$0xff] %vm619, %v618
      %v689 = vlaneseq
      %v690 = vshrl.u32 %v689, 7
      %v691 = vadd.s32 %v690, 8
      %v692 = vadd.s32 %v690, 16
      %v693 = vadd.s32 %v690, 24
      %v694 = vadd.s32 %v690, 32
      %v695 = vadd.s32 %v690, 40
      %v696 = vadd.s32 %v690, 48
      %v697 = vadd.s32 %v690, 56
      %v698 = vadd.s32 %v690, 64
      %v699 = vadd.s32 %v690, 72
      %v700 = vadd.s32 %v690, 80
      %v701 = vadd.s32 %v690, 88
      %v702 = vadd.s32 %v690, 96
      %v703 = vadd.s32 %v690, 104
      %v704 = vadd.s32 %v690, 112
      %v705 = vadd.s32 %v690, 120
      %v706 = vadd.s32 %v690, 128
      %v707 = vadd.s32 %v690, 136
      %v708 = vadd.s32 %v690, 144
      %v709 = vadd.s32 %v690, 152
      %v710 = vadd.s32 %v690, 160
      %v711 = vadd.s32 %v690, 168
      %v712 = vadd.s32 %v690, 176
      %v713 = vadd.s32 %v690, 184
      %v714 = vadd.s32 %v690, 192
      %v715 = vadd.s32 %v690, 200
      %v716 = vadd.s32 %v690, 208
      %v717 = vadd.s32 %v690, 216
      %v718 = vadd.s32 %v690, 224
      %v719 = vadd.s32 %v690, 232
      %v720 = vadd.s32 %v690, 240
      %v721 = vadd.s32 %v690, 248
      %vm722 = vcmp.lt.s32.totalorder %v690, 0
      %v723 = vsub.s32 0, %v690
      %v724 = vsel %vm722, %v723, %v690
      %v725 = vshrl.u32 %v724, 4
      %v726 = vand.u32 %v724, 15
      %v727 = vsub.s32 0, %v726
      %v728 = vsel %vm722, %v727, %v726
      %vm729 = vcmp.lt.s32.totalorder %v691, 0
      %v730 = vsub.s32 0, %v691
      %v731 = vsel %vm729, %v730, %v691
      %v732 = vshrl.u32 %v731, 4
      %v733 = vand.u32 %v731, 15
      %v734 = vsub.s32 0, %v733
      %v735 = vsel %vm729, %v734, %v733
      %vm736 = vcmp.lt.s32.totalorder %v692, 0
      %v737 = vsub.s32 0, %v692
      %v738 = vsel %vm736, %v737, %v692
      %v739 = vshrl.u32 %v738, 4
      %v740 = vand.u32 %v738, 15
      %v741 = vsub.s32 0, %v740
      %v742 = vsel %vm736, %v741, %v740
      %vm743 = vcmp.lt.s32.totalorder %v693, 0
      %v744 = vsub.s32 0, %v693
      %v745 = vsel %vm743, %v744, %v693
      %v746 = vshrl.u32 %v745, 4
      %v747 = vand.u32 %v745, 15
      %v748 = vsub.s32 0, %v747
      %v749 = vsel %vm743, %v748, %v747
      %vm750 = vcmp.lt.s32.totalorder %v694, 0
      %v751 = vsub.s32 0, %v694
      %v752 = vsel %vm750, %v751, %v694
      %v753 = vshrl.u32 %v752, 4
      %v754 = vand.u32 %v752, 15
      %v755 = vsub.s32 0, %v754
      %v756 = vsel %vm750, %v755, %v754
      %vm757 = vcmp.lt.s32.totalorder %v695, 0
      %v758 = vsub.s32 0, %v695
      %v759 = vsel %vm757, %v758, %v695
      %v760 = vshrl.u32 %v759, 4
      %v761 = vand.u32 %v759, 15
      %v762 = vsub.s32 0, %v761
      %v763 = vsel %vm757, %v762, %v761
      %vm764 = vcmp.lt.s32.totalorder %v696, 0
      %v765 = vsub.s32 0, %v696
      %v766 = vsel %vm764, %v765, %v696
      %v767 = vshrl.u32 %v766, 4
      %v768 = vand.u32 %v766, 15
      %v769 = vsub.s32 0, %v768
      %v770 = vsel %vm764, %v769, %v768
      %vm771 = vcmp.lt.s32.totalorder %v697, 0
      %v772 = vsub.s32 0, %v697
      %v773 = vsel %vm771, %v772, %v697
      %v774 = vshrl.u32 %v773, 4
      %v775 = vand.u32 %v773, 15
      %v776 = vsub.s32 0, %v775
      %v777 = vsel %vm771, %v776, %v775
      %vm778 = vcmp.lt.s32.totalorder %v698, 0
      %v779 = vsub.s32 0, %v698
      %v780 = vsel %vm778, %v779, %v698
      %v781 = vshrl.u32 %v780, 4
      %v782 = vand.u32 %v780, 15
      %v783 = vsub.s32 0, %v782
      %v784 = vsel %vm778, %v783, %v782
      %vm785 = vcmp.lt.s32.totalorder %v699, 0
      %v786 = vsub.s32 0, %v699
      %v787 = vsel %vm785, %v786, %v699
      %v788 = vshrl.u32 %v787, 4
      %v789 = vand.u32 %v787, 15
      %v790 = vsub.s32 0, %v789
      %v791 = vsel %vm785, %v790, %v789
      %vm792 = vcmp.lt.s32.totalorder %v700, 0
      %v793 = vsub.s32 0, %v700
      %v794 = vsel %vm792, %v793, %v700
      %v795 = vshrl.u32 %v794, 4
      %v796 = vand.u32 %v794, 15
      %v797 = vsub.s32 0, %v796
      %v798 = vsel %vm792, %v797, %v796
      %vm799 = vcmp.lt.s32.totalorder %v701, 0
      %v800 = vsub.s32 0, %v701
      %v801 = vsel %vm799, %v800, %v701
      %v802 = vshrl.u32 %v801, 4
      %v803 = vand.u32 %v801, 15
      %v804 = vsub.s32 0, %v803
      %v805 = vsel %vm799, %v804, %v803
      %vm806 = vcmp.lt.s32.totalorder %v702, 0
      %v807 = vsub.s32 0, %v702
      %v808 = vsel %vm806, %v807, %v702
      %v809 = vshrl.u32 %v808, 4
      %v810 = vand.u32 %v808, 15
      %v811 = vsub.s32 0, %v810
      %v812 = vsel %vm806, %v811, %v810
      %vm813 = vcmp.lt.s32.totalorder %v703, 0
      %v814 = vsub.s32 0, %v703
      %v815 = vsel %vm813, %v814, %v703
      %v816 = vshrl.u32 %v815, 4
      %v817 = vand.u32 %v815, 15
      %v818 = vsub.s32 0, %v817
      %v819 = vsel %vm813, %v818, %v817
      %vm820 = vcmp.lt.s32.totalorder %v704, 0
      %v821 = vsub.s32 0, %v704
      %v822 = vsel %vm820, %v821, %v704
      %v823 = vshrl.u32 %v822, 4
      %v824 = vand.u32 %v822, 15
      %v825 = vsub.s32 0, %v824
      %v826 = vsel %vm820, %v825, %v824
      %vm827 = vcmp.lt.s32.totalorder %v705, 0
      %v828 = vsub.s32 0, %v705
      %v829 = vsel %vm827, %v828, %v705
      %v830 = vshrl.u32 %v829, 4
      %v831 = vand.u32 %v829, 15
      %v832 = vsub.s32 0, %v831
      %v833 = vsel %vm827, %v832, %v831
      %vm834 = vcmp.lt.s32.totalorder %v706, 0
      %v835 = vsub.s32 0, %v706
      %v836 = vsel %vm834, %v835, %v706
      %v837 = vshrl.u32 %v836, 4
      %v838 = vand.u32 %v836, 15
      %v839 = vsub.s32 0, %v838
      %v840 = vsel %vm834, %v839, %v838
      %vm841 = vcmp.lt.s32.totalorder %v707, 0
      %v842 = vsub.s32 0, %v707
      %v843 = vsel %vm841, %v842, %v707
      %v844 = vshrl.u32 %v843, 4
      %v845 = vand.u32 %v843, 15
      %v846 = vsub.s32 0, %v845
      %v847 = vsel %vm841, %v846, %v845
      %vm848 = vcmp.lt.s32.totalorder %v708, 0
      %v849 = vsub.s32 0, %v708
      %v850 = vsel %vm848, %v849, %v708
      %v851 = vshrl.u32 %v850, 4
      %v852 = vand.u32 %v850, 15
      %v853 = vsub.s32 0, %v852
      %v854 = vsel %vm848, %v853, %v852
      %vm855 = vcmp.lt.s32.totalorder %v709, 0
      %v856 = vsub.s32 0, %v709
      %v857 = vsel %vm855, %v856, %v709
      %v858 = vshrl.u32 %v857, 4
      %v859 = vand.u32 %v857, 15
      %v860 = vsub.s32 0, %v859
      %v861 = vsel %vm855, %v860, %v859
      %vm862 = vcmp.lt.s32.totalorder %v710, 0
      %v863 = vsub.s32 0, %v710
      %v864 = vsel %vm862, %v863, %v710
      %v865 = vshrl.u32 %v864, 4
      %v866 = vand.u32 %v864, 15
      %v867 = vsub.s32 0, %v866
      %v868 = vsel %vm862, %v867, %v866
      %vm869 = vcmp.lt.s32.totalorder %v711, 0
      %v870 = vsub.s32 0, %v711
      %v871 = vsel %vm869, %v870, %v711
      %v872 = vshrl.u32 %v871, 4
      %v873 = vand.u32 %v871, 15
      %v874 = vsub.s32 0, %v873
      %v875 = vsel %vm869, %v874, %v873
      %vm876 = vcmp.lt.s32.totalorder %v712, 0
      %v877 = vsub.s32 0, %v712
      %v878 = vsel %vm876, %v877, %v712
      %v879 = vshrl.u32 %v878, 4
      %v880 = vand.u32 %v878, 15
      %v881 = vsub.s32 0, %v880
      %v882 = vsel %vm876, %v881, %v880
      %vm883 = vcmp.lt.s32.totalorder %v713, 0
      %v884 = vsub.s32 0, %v713
      %v885 = vsel %vm883, %v884, %v713
      %v886 = vshrl.u32 %v885, 4
      %v887 = vand.u32 %v885, 15
      %v888 = vsub.s32 0, %v887
      %v889 = vsel %vm883, %v888, %v887
      %vm890 = vcmp.lt.s32.totalorder %v714, 0
      %v891 = vsub.s32 0, %v714
      %v892 = vsel %vm890, %v891, %v714
      %v893 = vshrl.u32 %v892, 4
      %v894 = vand.u32 %v892, 15
      %v895 = vsub.s32 0, %v894
      %v896 = vsel %vm890, %v895, %v894
      %vm897 = vcmp.lt.s32.totalorder %v715, 0
      %v898 = vsub.s32 0, %v715
      %v899 = vsel %vm897, %v898, %v715
      %v900 = vshrl.u32 %v899, 4
      %v901 = vand.u32 %v899, 15
      %v902 = vsub.s32 0, %v901
      %v903 = vsel %vm897, %v902, %v901
      %vm904 = vcmp.lt.s32.totalorder %v716, 0
      %v905 = vsub.s32 0, %v716
      %v906 = vsel %vm904, %v905, %v716
      %v907 = vshrl.u32 %v906, 4
      %v908 = vand.u32 %v906, 15
      %v909 = vsub.s32 0, %v908
      %v910 = vsel %vm904, %v909, %v908
      %vm911 = vcmp.lt.s32.totalorder %v717, 0
      %v912 = vsub.s32 0, %v717
      %v913 = vsel %vm911, %v912, %v717
      %v914 = vshrl.u32 %v913, 4
      %v915 = vand.u32 %v913, 15
      %v916 = vsub.s32 0, %v915
      %v917 = vsel %vm911, %v916, %v915
      %vm918 = vcmp.lt.s32.totalorder %v718, 0
      %v919 = vsub.s32 0, %v718
      %v920 = vsel %vm918, %v919, %v718
      %v921 = vshrl.u32 %v920, 4
      %v922 = vand.u32 %v920, 15
      %v923 = vsub.s32 0, %v922
      %v924 = vsel %vm918, %v923, %v922
      %vm925 = vcmp.lt.s32.totalorder %v719, 0
      %v926 = vsub.s32 0, %v719
      %v927 = vsel %vm925, %v926, %v719
      %v928 = vshrl.u32 %v927, 4
      %v929 = vand.u32 %v927, 15
      %v930 = vsub.s32 0, %v929
      %v931 = vsel %vm925, %v930, %v929
      %vm932 = vcmp.lt.s32.totalorder %v720, 0
      %v933 = vsub.s32 0, %v720
      %v934 = vsel %vm932, %v933, %v720
      %v935 = vshrl.u32 %v934, 4
      %v936 = vand.u32 %v934, 15
      %v937 = vsub.s32 0, %v936
      %v938 = vsel %vm932, %v937, %v936
      %vm939 = vcmp.lt.s32.totalorder %v721, 0
      %v940 = vsub.s32 0, %v721
      %v941 = vsel %vm939, %v940, %v721
      %v942 = vshrl.u32 %v941, 4
      %v943 = vand.u32 %v941, 15
      %v944 = vsub.s32 0, %v943
      %v945 = vsel %vm939, %v944, %v943
      %vm946 = vcmp.ne.s32.totalorder %v728, 0
      %vm947 = vcmp.ne.s32.totalorder %v735, 0
      %vm948 = vcmp.ne.s32.totalorder %v742, 0
      %vm949 = vcmp.ne.s32.totalorder %v749, 0
      %vm950 = vcmp.ne.s32.totalorder %v756, 0
      %vm951 = vcmp.ne.s32.totalorder %v763, 0
      %vm952 = vcmp.ne.s32.totalorder %v770, 0
      %vm953 = vcmp.ne.s32.totalorder %v777, 0
      %vm954 = vcmp.ne.s32.totalorder %v784, 0
      %vm955 = vcmp.ne.s32.totalorder %v791, 0
      %vm956 = vcmp.ne.s32.totalorder %v798, 0
      %vm957 = vcmp.ne.s32.totalorder %v805, 0
      %vm958 = vcmp.ne.s32.totalorder %v812, 0
      %vm959 = vcmp.ne.s32.totalorder %v819, 0
      %vm960 = vcmp.ne.s32.totalorder %v826, 0
      %vm961 = vcmp.ne.s32.totalorder %v833, 0
      %vm962 = vcmp.ne.s32.totalorder %v840, 0
      %vm963 = vcmp.ne.s32.totalorder %v847, 0
      %vm964 = vcmp.ne.s32.totalorder %v854, 0
      %vm965 = vcmp.ne.s32.totalorder %v861, 0
      %vm966 = vcmp.ne.s32.totalorder %v868, 0
      %vm967 = vcmp.ne.s32.totalorder %v875, 0
      %vm968 = vcmp.ne.s32.totalorder %v882, 0
      %vm969 = vcmp.ne.s32.totalorder %v889, 0
      %vm970 = vcmp.ne.s32.totalorder %v896, 0
      %vm971 = vcmp.ne.s32.totalorder %v903, 0
      %vm972 = vcmp.ne.s32.totalorder %v910, 0
      %vm973 = vcmp.ne.s32.totalorder %v917, 0
      %vm974 = vcmp.ne.s32.totalorder %v924, 0
      %vm975 = vcmp.ne.s32.totalorder %v931, 0
      %vm976 = vcmp.ne.s32.totalorder %v938, 0
      %vm977 = vcmp.ne.s32.totalorder %v945, 0
      %vm978 = vcmp.lt.s32.totalorder %v728, 0
      %vm979 = vcmp.lt.s32.totalorder %v735, 0
      %vm980 = vcmp.lt.s32.totalorder %v742, 0
      %vm981 = vcmp.lt.s32.totalorder %v749, 0
      %vm982 = vcmp.lt.s32.totalorder %v756, 0
      %vm983 = vcmp.lt.s32.totalorder %v763, 0
      %vm984 = vcmp.lt.s32.totalorder %v770, 0
      %vm985 = vcmp.lt.s32.totalorder %v777, 0
      %vm986 = vcmp.lt.s32.totalorder %v784, 0
      %vm987 = vcmp.lt.s32.totalorder %v791, 0
      %vm988 = vcmp.lt.s32.totalorder %v798, 0
      %vm989 = vcmp.lt.s32.totalorder %v805, 0
      %vm990 = vcmp.lt.s32.totalorder %v812, 0
      %vm991 = vcmp.lt.s32.totalorder %v819, 0
      %vm992 = vcmp.lt.s32.totalorder %v826, 0
      %vm993 = vcmp.lt.s32.totalorder %v833, 0
      %vm994 = vcmp.lt.s32.totalorder %v840, 0
      %vm995 = vcmp.lt.s32.totalorder %v847, 0
      %vm996 = vcmp.lt.s32.totalorder %v854, 0
      %vm997 = vcmp.lt.s32.totalorder %v861, 0
      %vm998 = vcmp.lt.s32.totalorder %v868, 0
      %vm999 = vcmp.lt.s32.totalorder %v875, 0
      %vm1000 = vcmp.lt.s32.totalorder %v882, 0
      %vm1001 = vcmp.lt.s32.totalorder %v889, 0
      %vm1002 = vcmp.lt.s32.totalorder %v896, 0
      %vm1003 = vcmp.lt.s32.totalorder %v903, 0
      %vm1004 = vcmp.lt.s32.totalorder %v910, 0
      %vm1005 = vcmp.lt.s32.totalorder %v917, 0
      %vm1006 = vcmp.lt.s32.totalorder %v924, 0
      %vm1007 = vcmp.lt.s32.totalorder %v931, 0
      %vm1008 = vcmp.lt.s32.totalorder %v938, 0
      %vm1009 = vcmp.lt.s32.totalorder %v945, 0
      %vm1010 = vmand %vm978, %vm946
      %vm1011 = vmand %vm979, %vm947
      %vm1012 = vmand %vm980, %vm948
      %vm1013 = vmand %vm981, %vm949
      %vm1014 = vmand %vm982, %vm950
      %vm1015 = vmand %vm983, %vm951
      %vm1016 = vmand %vm984, %vm952
      %vm1017 = vmand %vm985, %vm953
      %vm1018 = vmand %vm986, %vm954
      %vm1019 = vmand %vm987, %vm955
      %vm1020 = vmand %vm988, %vm956
      %vm1021 = vmand %vm989, %vm957
      %vm1022 = vmand %vm990, %vm958
      %vm1023 = vmand %vm991, %vm959
      %vm1024 = vmand %vm992, %vm960
      %vm1025 = vmand %vm993, %vm961
      %vm1026 = vmand %vm994, %vm962
      %vm1027 = vmand %vm995, %vm963
      %vm1028 = vmand %vm996, %vm964
      %vm1029 = vmand %vm997, %vm965
      %vm1030 = vmand %vm998, %vm966
      %vm1031 = vmand %vm999, %vm967
      %vm1032 = vmand %vm1000, %vm968
      %vm1033 = vmand %vm1001, %vm969
      %vm1034 = vmand %vm1002, %vm970
      %vm1035 = vmand %vm1003, %vm971
      %vm1036 = vmand %vm1004, %vm972
      %vm1037 = vmand %vm1005, %vm973
      %vm1038 = vmand %vm1006, %vm974
      %vm1039 = vmand %vm1007, %vm975
      %vm1040 = vmand %vm1008, %vm976
      %vm1041 = vmand %vm1009, %vm977
      %v1042 = vadd.s32 %v728, 16
      %v1043 = vadd.s32 %v735, 16
      %v1044 = vadd.s32 %v742, 16
      %v1045 = vadd.s32 %v749, 16
      %v1046 = vadd.s32 %v756, 16
      %v1047 = vadd.s32 %v763, 16
      %v1048 = vadd.s32 %v770, 16
      %v1049 = vadd.s32 %v777, 16
      %v1050 = vadd.s32 %v784, 16
      %v1051 = vadd.s32 %v791, 16
      %v1052 = vadd.s32 %v798, 16
      %v1053 = vadd.s32 %v805, 16
      %v1054 = vadd.s32 %v812, 16
      %v1055 = vadd.s32 %v819, 16
      %v1056 = vadd.s32 %v826, 16
      %v1057 = vadd.s32 %v833, 16
      %v1058 = vadd.s32 %v840, 16
      %v1059 = vadd.s32 %v847, 16
      %v1060 = vadd.s32 %v854, 16
      %v1061 = vadd.s32 %v861, 16
      %v1062 = vadd.s32 %v868, 16
      %v1063 = vadd.s32 %v875, 16
      %v1064 = vadd.s32 %v882, 16
      %v1065 = vadd.s32 %v889, 16
      %v1066 = vadd.s32 %v896, 16
      %v1067 = vadd.s32 %v903, 16
      %v1068 = vadd.s32 %v910, 16
      %v1069 = vadd.s32 %v917, 16
      %v1070 = vadd.s32 %v924, 16
      %v1071 = vadd.s32 %v931, 16
      %v1072 = vadd.s32 %v938, 16
      %v1073 = vadd.s32 %v945, 16
      %v1074 = vsel %vm1010, %v1042, %v728
      %v1075 = vsel %vm1011, %v1043, %v735
      %v1076 = vsel %vm1012, %v1044, %v742
      %v1077 = vsel %vm1013, %v1045, %v749
      %v1078 = vsel %vm1014, %v1046, %v756
      %v1079 = vsel %vm1015, %v1047, %v763
      %v1080 = vsel %vm1016, %v1048, %v770
      %v1081 = vsel %vm1017, %v1049, %v777
      %v1082 = vsel %vm1018, %v1050, %v784
      %v1083 = vsel %vm1019, %v1051, %v791
      %v1084 = vsel %vm1020, %v1052, %v798
      %v1085 = vsel %vm1021, %v1053, %v805
      %v1086 = vsel %vm1022, %v1054, %v812
      %v1087 = vsel %vm1023, %v1055, %v819
      %v1088 = vsel %vm1024, %v1056, %v826
      %v1089 = vsel %vm1025, %v1057, %v833
      %v1090 = vsel %vm1026, %v1058, %v840
      %v1091 = vsel %vm1027, %v1059, %v847
      %v1092 = vsel %vm1028, %v1060, %v854
      %v1093 = vsel %vm1029, %v1061, %v861
      %v1094 = vsel %vm1030, %v1062, %v868
      %v1095 = vsel %vm1031, %v1063, %v875
      %v1096 = vsel %vm1032, %v1064, %v882
      %v1097 = vsel %vm1033, %v1065, %v889
      %v1098 = vsel %vm1034, %v1066, %v896
      %v1099 = vsel %vm1035, %v1067, %v903
      %v1100 = vsel %vm1036, %v1068, %v910
      %v1101 = vsel %vm1037, %v1069, %v917
      %v1102 = vsel %vm1038, %v1070, %v924
      %v1103 = vsel %vm1039, %v1071, %v931
      %v1104 = vsel %vm1040, %v1072, %v938
      %v1105 = vsel %vm1041, %v1073, %v945
      %vm1106 = vcmp.gt.s32.totalorder %v1074, 0
      %vm1107 = vcmp.gt.s32.totalorder %v1075, 0
      %vm1108 = vcmp.gt.s32.totalorder %v1076, 0
      %vm1109 = vcmp.gt.s32.totalorder %v1077, 0
      %vm1110 = vcmp.gt.s32.totalorder %v1078, 0
      %vm1111 = vcmp.gt.s32.totalorder %v1079, 0
      %vm1112 = vcmp.gt.s32.totalorder %v1080, 0
      %vm1113 = vcmp.gt.s32.totalorder %v1081, 0
      %vm1114 = vcmp.gt.s32.totalorder %v1082, 0
      %vm1115 = vcmp.gt.s32.totalorder %v1083, 0
      %vm1116 = vcmp.gt.s32.totalorder %v1084, 0
      %vm1117 = vcmp.gt.s32.totalorder %v1085, 0
      %vm1118 = vcmp.gt.s32.totalorder %v1086, 0
      %vm1119 = vcmp.gt.s32.totalorder %v1087, 0
      %vm1120 = vcmp.gt.s32.totalorder %v1088, 0
      %vm1121 = vcmp.gt.s32.totalorder %v1089, 0
      %vm1122 = vcmp.gt.s32.totalorder %v1090, 0
      %vm1123 = vcmp.gt.s32.totalorder %v1091, 0
      %vm1124 = vcmp.gt.s32.totalorder %v1092, 0
      %vm1125 = vcmp.gt.s32.totalorder %v1093, 0
      %vm1126 = vcmp.gt.s32.totalorder %v1094, 0
      %vm1127 = vcmp.gt.s32.totalorder %v1095, 0
      %vm1128 = vcmp.gt.s32.totalorder %v1096, 0
      %vm1129 = vcmp.gt.s32.totalorder %v1097, 0
      %vm1130 = vcmp.gt.s32.totalorder %v1098, 0
      %vm1131 = vcmp.gt.s32.totalorder %v1099, 0
      %vm1132 = vcmp.gt.s32.totalorder %v1100, 0
      %vm1133 = vcmp.gt.s32.totalorder %v1101, 0
      %vm1134 = vcmp.gt.s32.totalorder %v1102, 0
      %vm1135 = vcmp.gt.s32.totalorder %v1103, 0
      %vm1136 = vcmp.gt.s32.totalorder %v1104, 0
      %vm1137 = vcmp.gt.s32.totalorder %v1105, 0
      %vm1138 = vcmp.lt.s32.totalorder %v1074, 15
      %vm1139 = vcmp.lt.s32.totalorder %v1075, 15
      %vm1140 = vcmp.lt.s32.totalorder %v1076, 15
      %vm1141 = vcmp.lt.s32.totalorder %v1077, 15
      %vm1142 = vcmp.lt.s32.totalorder %v1078, 15
      %vm1143 = vcmp.lt.s32.totalorder %v1079, 15
      %vm1144 = vcmp.lt.s32.totalorder %v1080, 15
      %vm1145 = vcmp.lt.s32.totalorder %v1081, 15
      %vm1146 = vcmp.lt.s32.totalorder %v1082, 15
      %vm1147 = vcmp.lt.s32.totalorder %v1083, 15
      %vm1148 = vcmp.lt.s32.totalorder %v1084, 15
      %vm1149 = vcmp.lt.s32.totalorder %v1085, 15
      %vm1150 = vcmp.lt.s32.totalorder %v1086, 15
      %vm1151 = vcmp.lt.s32.totalorder %v1087, 15
      %vm1152 = vcmp.lt.s32.totalorder %v1088, 15
      %vm1153 = vcmp.lt.s32.totalorder %v1089, 15
      %vm1154 = vcmp.lt.s32.totalorder %v1090, 15
      %vm1155 = vcmp.lt.s32.totalorder %v1091, 15
      %vm1156 = vcmp.lt.s32.totalorder %v1092, 15
      %vm1157 = vcmp.lt.s32.totalorder %v1093, 15
      %vm1158 = vcmp.lt.s32.totalorder %v1094, 15
      %vm1159 = vcmp.lt.s32.totalorder %v1095, 15
      %vm1160 = vcmp.lt.s32.totalorder %v1096, 15
      %vm1161 = vcmp.lt.s32.totalorder %v1097, 15
      %vm1162 = vcmp.lt.s32.totalorder %v1098, 15
      %vm1163 = vcmp.lt.s32.totalorder %v1099, 15
      %vm1164 = vcmp.lt.s32.totalorder %v1100, 15
      %vm1165 = vcmp.lt.s32.totalorder %v1101, 15
      %vm1166 = vcmp.lt.s32.totalorder %v1102, 15
      %vm1167 = vcmp.lt.s32.totalorder %v1103, 15
      %vm1168 = vcmp.lt.s32.totalorder %v1104, 15
      %vm1169 = vcmp.lt.s32.totalorder %v1105, 15
      %v1170 = vld [vmem:[#allocation2] sm:$0xff]
      %v1171 = vld [vmem:[#allocation2 + $0x8] sm:$0xff]
      %v1172 = vld [vmem:[#allocation2 + $0x10] sm:$0xff]
      %v1173 = vld [vmem:[#allocation2 + $0x18] sm:$0xff]
      %v1174 = vld [vmem:[#allocation2 + $0x20] sm:$0xff]
      %v1175 = vld [vmem:[#allocation2 + $0x28] sm:$0xff]
      %v1176 = vld [vmem:[#allocation2 + $0x30] sm:$0xff]
      %v1177 = vld [vmem:[#allocation2 + $0x38] sm:$0xff]
      %v1178 = vld [vmem:[#allocation2 + $0x40] sm:$0xff]
      %v1179 = vld [vmem:[#allocation2 + $0x48] sm:$0xff]
      %v1180 = vld [vmem:[#allocation2 + $0x50] sm:$0xff]
      %v1181 = vld [vmem:[#allocation2 + $0x58] sm:$0xff]
      %v1182 = vld [vmem:[#allocation2 + $0x60] sm:$0xff]
      %v1183 = vld [vmem:[#allocation2 + $0x68] sm:$0xff]
      %v1184 = vld [vmem:[#allocation2 + $0x70] sm:$0xff]
      %v1185 = vld [vmem:[#allocation2 + $0x78] sm:$0xff]
      %v1186 = vld [vmem:[#allocation2 + $0x80] sm:$0xff]
      %v1187 = vld [vmem:[#allocation2 + $0x88] sm:$0xff]
      %v1188 = vld [vmem:[#allocation2 + $0x90] sm:$0xff]
      %v1189 = vld [vmem:[#allocation2 + $0x98] sm:$0xff]
      %v1190 = vld [vmem:[#allocation2 + $0xa0] sm:$0xff]
      %v1191 = vld [vmem:[#allocation2 + $0xa8] sm:$0xff]
      %v1192 = vld [vmem:[#allocation2 + $0xb0] sm:$0xff]
      %v1193 = vld [vmem:[#allocation2 + $0xb8] sm:$0xff]
      %v1194 = vld [vmem:[#allocation2 + $0xc0] sm:$0xff]
      %v1195 = vld [vmem:[#allocation2 + $0xc8] sm:$0xff]
      %v1196 = vld [vmem:[#allocation2 + $0xd0] sm:$0xff]
      %v1197 = vld [vmem:[#allocation2 + $0xd8] sm:$0xff]
      %v1198 = vld [vmem:[#allocation2 + $0xe0] sm:$0xff]
      %v1199 = vld [vmem:[#allocation2 + $0xe8] sm:$0xff]
      %v1200 = vld [vmem:[#allocation2 + $0xf0] sm:$0xff]
      %v1201 = vld [vmem:[#allocation2 + $0xf8] sm:$0xff]
      %v1202 = vsel %vm1106, %v1170, 0.0
      %v1203 = vsel %vm1107, %v1171, 0.0
      %v1204 = vsel %vm1108, %v1172, 0.0
      %v1205 = vsel %vm1109, %v1173, 0.0
      %v1206 = vsel %vm1110, %v1174, 0.0
      %v1207 = vsel %vm1111, %v1175, 0.0
      %v1208 = vsel %vm1112, %v1176, 0.0
      %v1209 = vsel %vm1113, %v1177, 0.0
      %v1210 = vsel %vm1114, %v1178, 0.0
      %v1211 = vsel %vm1115, %v1179, 0.0
      %v1212 = vsel %vm1116, %v1180, 0.0
      %v1213 = vsel %vm1117, %v1181, 0.0
      %v1214 = vsel %vm1118, %v1182, 0.0
      %v1215 = vsel %vm1119, %v1183, 0.0
      %v1216 = vsel %vm1120, %v1184, 0.0
      %v1217 = vsel %vm1121, %v1185, 0.0
      %v1218 = vsel %vm1122, %v1186, 0.0
      %v1219 = vsel %vm1123, %v1187, 0.0
      %v1220 = vsel %vm1124, %v1188, 0.0
      %v1221 = vsel %vm1125, %v1189, 0.0
      %v1222 = vsel %vm1126, %v1190, 0.0
      %v1223 = vsel %vm1127, %v1191, 0.0
      %v1224 = vsel %vm1128, %v1192, 0.0
      %v1225 = vsel %vm1129, %v1193, 0.0
      %v1226 = vsel %vm1130, %v1194, 0.0
      %v1227 = vsel %vm1131, %v1195, 0.0
      %v1228 = vsel %vm1132, %v1196, 0.0
      %v1229 = vsel %vm1133, %v1197, 0.0
      %v1230 = vsel %vm1134, %v1198, 0.0
      %v1231 = vsel %vm1135, %v1199, 0.0
      %v1232 = vsel %vm1136, %v1200, 0.0
      %v1233 = vsel %vm1137, %v1201, 0.0
      %v1234 = vld [vmem:[#allocation2 + $0x1] sm:$0xff]
      %v1235 = vld [vmem:[#allocation2 + $0x9] sm:$0xff]
      %v1236 = vld [vmem:[#allocation2 + $0x11] sm:$0xff]
      %v1237 = vld [vmem:[#allocation2 + $0x19] sm:$0xff]
      %v1238 = vld [vmem:[#allocation2 + $0x21] sm:$0xff]
      %v1239 = vld [vmem:[#allocation2 + $0x29] sm:$0xff]
      %v1240 = vld [vmem:[#allocation2 + $0x31] sm:$0xff]
      %v1241 = vld [vmem:[#allocation2 + $0x39] sm:$0xff]
      %v1242 = vld [vmem:[#allocation2 + $0x41] sm:$0xff]
      %v1243 = vld [vmem:[#allocation2 + $0x49] sm:$0xff]
      %v1244 = vld [vmem:[#allocation2 + $0x51] sm:$0xff]
      %v1245 = vld [vmem:[#allocation2 + $0x59] sm:$0xff]
      %v1246 = vld [vmem:[#allocation2 + $0x61] sm:$0xff]
      %v1247 = vld [vmem:[#allocation2 + $0x69] sm:$0xff]
      %v1248 = vld [vmem:[#allocation2 + $0x71] sm:$0xff]
      %v1249 = vld [vmem:[#allocation2 + $0x79] sm:$0xff]
      %v1250 = vld [vmem:[#allocation2 + $0x81] sm:$0xff]
      %v1251 = vld [vmem:[#allocation2 + $0x89] sm:$0xff]
      %v1252 = vld [vmem:[#allocation2 + $0x91] sm:$0xff]
      %v1253 = vld [vmem:[#allocation2 + $0x99] sm:$0xff]
      %v1254 = vld [vmem:[#allocation2 + $0xa1] sm:$0xff]
      %v1255 = vld [vmem:[#allocation2 + $0xa9] sm:$0xff]
      %v1256 = vld [vmem:[#allocation2 + $0xb1] sm:$0xff]
      %v1257 = vld [vmem:[#allocation2 + $0xb9] sm:$0xff]
      %v1258 = vld [vmem:[#allocation2 + $0xc1] sm:$0xff]
      %v1259 = vld [vmem:[#allocation2 + $0xc9] sm:$0xff]
      %v1260 = vld [vmem:[#allocation2 + $0xd1] sm:$0xff]
      %v1261 = vld [vmem:[#allocation2 + $0xd9] sm:$0xff]
      %v1262 = vld [vmem:[#allocation2 + $0xe1] sm:$0xff]
      %v1263 = vld [vmem:[#allocation2 + $0xe9] sm:$0xff]
      %v1264 = vld [vmem:[#allocation2 + $0xf1] sm:$0xff]
      %v1265 = vld [vmem:[#allocation2 + $0xf9] sm:$0xff]
      %v1266 = vld [vmem:[#allocation2 + $0x2] sm:$0xff]
      %v1267 = vld [vmem:[#allocation2 + $0xa] sm:$0xff]
      %v1268 = vld [vmem:[#allocation2 + $0x12] sm:$0xff]
      %v1269 = vld [vmem:[#allocation2 + $0x1a] sm:$0xff]
      %v1270 = vld [vmem:[#allocation2 + $0x22] sm:$0xff]
      %v1271 = vld [vmem:[#allocation2 + $0x2a] sm:$0xff]
      %v1272 = vld [vmem:[#allocation2 + $0x32] sm:$0xff]
      %v1273 = vld [vmem:[#allocation2 + $0x3a] sm:$0xff]
      %v1274 = vld [vmem:[#allocation2 + $0x42] sm:$0xff]
      %v1275 = vld [vmem:[#allocation2 + $0x4a] sm:$0xff]
      %v1276 = vld [vmem:[#allocation2 + $0x52] sm:$0xff]
      %v1277 = vld [vmem:[#allocation2 + $0x5a] sm:$0xff]
      %v1278 = vld [vmem:[#allocation2 + $0x62] sm:$0xff]
      %v1279 = vld [vmem:[#allocation2 + $0x6a] sm:$0xff]
      %v1280 = vld [vmem:[#allocation2 + $0x72] sm:$0xff]
      %v1281 = vld [vmem:[#allocation2 + $0x7a] sm:$0xff]
      %v1282 = vld [vmem:[#allocation2 + $0x82] sm:$0xff]
      %v1283 = vld [vmem:[#allocation2 + $0x8a] sm:$0xff]
      %v1284 = vld [vmem:[#allocation2 + $0x92] sm:$0xff]
      %v1285 = vld [vmem:[#allocation2 + $0x9a] sm:$0xff]
      %v1286 = vld [vmem:[#allocation2 + $0xa2] sm:$0xff]
      %v1287 = vld [vmem:[#allocation2 + $0xaa] sm:$0xff]
      %v1288 = vld [vmem:[#allocation2 + $0xb2] sm:$0xff]
      %v1289 = vld [vmem:[#allocation2 + $0xba] sm:$0xff]
      %v1290 = vld [vmem:[#allocation2 + $0xc2] sm:$0xff]
      %v1291 = vld [vmem:[#allocation2 + $0xca] sm:$0xff]
      %v1292 = vld [vmem:[#allocation2 + $0xd2] sm:$0xff]
      %v1293 = vld [vmem:[#allocation2 + $0xda] sm:$0xff]
      %v1294 = vld [vmem:[#allocation2 + $0xe2] sm:$0xff]
      %v1295 = vld [vmem:[#allocation2 + $0xea] sm:$0xff]
      %v1296 = vld [vmem:[#allocation2 + $0xf2] sm:$0xff]
      %v1297 = vld [vmem:[#allocation2 + $0xfa] sm:$0xff]
      %v1298 = vsel %vm1138, %v1266, 0.0
      %v1299 = vsel %vm1139, %v1267, 0.0
      %v1300 = vsel %vm1140, %v1268, 0.0
      %v1301 = vsel %vm1141, %v1269, 0.0
      %v1302 = vsel %vm1142, %v1270, 0.0
      %v1303 = vsel %vm1143, %v1271, 0.0
      %v1304 = vsel %vm1144, %v1272, 0.0
      %v1305 = vsel %vm1145, %v1273, 0.0
      %v1306 = vsel %vm1146, %v1274, 0.0
      %v1307 = vsel %vm1147, %v1275, 0.0
      %v1308 = vsel %vm1148, %v1276, 0.0
      %v1309 = vsel %vm1149, %v1277, 0.0
      %v1310 = vsel %vm1150, %v1278, 0.0
      %v1311 = vsel %vm1151, %v1279, 0.0
      %v1312 = vsel %vm1152, %v1280, 0.0
      %v1313 = vsel %vm1153, %v1281, 0.0
      %v1314 = vsel %vm1154, %v1282, 0.0
      %v1315 = vsel %vm1155, %v1283, 0.0
      %v1316 = vsel %vm1156, %v1284, 0.0
      %v1317 = vsel %vm1157, %v1285, 0.0
      %v1318 = vsel %vm1158, %v1286, 0.0
      %v1319 = vsel %vm1159, %v1287, 0.0
      %v1320 = vsel %vm1160, %v1288, 0.0
      %v1321 = vsel %vm1161, %v1289, 0.0
      %v1322 = vsel %vm1162, %v1290, 0.0
      %v1323 = vsel %vm1163, %v1291, 0.0
      %v1324 = vsel %vm1164, %v1292, 0.0
      %v1325 = vsel %vm1165, %v1293, 0.0
      %v1326 = vsel %vm1166, %v1294, 0.0
      %v1327 = vsel %vm1167, %v1295, 0.0
      %v1328 = vsel %vm1168, %v1296, 0.0
      %v1329 = vsel %vm1169, %v1297, 0.0
      %v1330 = vld [vmem:[#allocation2 + $0x100] sm:$0xff]
      %v1331 = vld [vmem:[#allocation2 + $0x108] sm:$0xff]
      %v1332 = vsel %vm1106, %v1172, 0.0
      %v1333 = vsel %vm1107, %v1173, 0.0
      %v1334 = vsel %vm1108, %v1174, 0.0
      %v1335 = vsel %vm1109, %v1175, 0.0
      %v1336 = vsel %vm1110, %v1176, 0.0
      %v1337 = vsel %vm1111, %v1177, 0.0
      %v1338 = vsel %vm1112, %v1178, 0.0
      %v1339 = vsel %vm1113, %v1179, 0.0
      %v1340 = vsel %vm1114, %v1180, 0.0
      %v1341 = vsel %vm1115, %v1181, 0.0
      %v1342 = vsel %vm1116, %v1182, 0.0
      %v1343 = vsel %vm1117, %v1183, 0.0
      %v1344 = vsel %vm1118, %v1184, 0.0
      %v1345 = vsel %vm1119, %v1185, 0.0
      %v1346 = vsel %vm1120, %v1186, 0.0
      %v1347 = vsel %vm1121, %v1187, 0.0
      %v1348 = vsel %vm1122, %v1188, 0.0
      %v1349 = vsel %vm1123, %v1189, 0.0
      %v1350 = vsel %vm1124, %v1190, 0.0
      %v1351 = vsel %vm1125, %v1191, 0.0
      %v1352 = vsel %vm1126, %v1192, 0.0
      %v1353 = vsel %vm1127, %v1193, 0.0
      %v1354 = vsel %vm1128, %v1194, 0.0
      %v1355 = vsel %vm1129, %v1195, 0.0
      %v1356 = vsel %vm1130, %v1196, 0.0
      %v1357 = vsel %vm1131, %v1197, 0.0
      %v1358 = vsel %vm1132, %v1198, 0.0
      %v1359 = vsel %vm1133, %v1199, 0.0
      %v1360 = vsel %vm1134, %v1200, 0.0
      %v1361 = vsel %vm1135, %v1201, 0.0
      %v1362 = vsel %vm1136, %v1330, 0.0
      %v1363 = vsel %vm1137, %v1331, 0.0
      %v1364 = vld [vmem:[#allocation2 + $0x101] sm:$0xff]
      %v1365 = vld [vmem:[#allocation2 + $0x109] sm:$0xff]
      %v1366 = vld [vmem:[#allocation2 + $0x102] sm:$0xff]
      %v1367 = vld [vmem:[#allocation2 + $0x10a] sm:$0xff]
      %v1368 = vsel %vm1138, %v1268, 0.0
      %v1369 = vsel %vm1139, %v1269, 0.0
      %v1370 = vsel %vm1140, %v1270, 0.0
      %v1371 = vsel %vm1141, %v1271, 0.0
      %v1372 = vsel %vm1142, %v1272, 0.0
      %v1373 = vsel %vm1143, %v1273, 0.0
      %v1374 = vsel %vm1144, %v1274, 0.0
      %v1375 = vsel %vm1145, %v1275, 0.0
      %v1376 = vsel %vm1146, %v1276, 0.0
      %v1377 = vsel %vm1147, %v1277, 0.0
      %v1378 = vsel %vm1148, %v1278, 0.0
      %v1379 = vsel %vm1149, %v1279, 0.0
      %v1380 = vsel %vm1150, %v1280, 0.0
      %v1381 = vsel %vm1151, %v1281, 0.0
      %v1382 = vsel %vm1152, %v1282, 0.0
      %v1383 = vsel %vm1153, %v1283, 0.0
      %v1384 = vsel %vm1154, %v1284, 0.0
      %v1385 = vsel %vm1155, %v1285, 0.0
      %v1386 = vsel %vm1156, %v1286, 0.0
      %v1387 = vsel %vm1157, %v1287, 0.0
      %v1388 = vsel %vm1158, %v1288, 0.0
      %v1389 = vsel %vm1159, %v1289, 0.0
      %v1390 = vsel %vm1160, %v1290, 0.0
      %v1391 = vsel %vm1161, %v1291, 0.0
      %v1392 = vsel %vm1162, %v1292, 0.0
      %v1393 = vsel %vm1163, %v1293, 0.0
      %v1394 = vsel %vm1164, %v1294, 0.0
      %v1395 = vsel %vm1165, %v1295, 0.0
      %v1396 = vsel %vm1166, %v1296, 0.0
      %v1397 = vsel %vm1167, %v1297, 0.0
      %v1398 = vsel %vm1168, %v1366, 0.0
      %v1399 = vsel %vm1169, %v1367, 0.0
      %v1400 = vld [vmem:[#allocation2 + $0x110] sm:$0xff]
      %v1401 = vld [vmem:[#allocation2 + $0x118] sm:$0xff]
      %v1402 = vsel %vm1106, %v1174, 0.0
      %v1403 = vsel %vm1107, %v1175, 0.0
      %v1404 = vsel %vm1108, %v1176, 0.0
      %v1405 = vsel %vm1109, %v1177, 0.0
      %v1406 = vsel %vm1110, %v1178, 0.0
      %v1407 = vsel %vm1111, %v1179, 0.0
      %v1408 = vsel %vm1112, %v1180, 0.0
      %v1409 = vsel %vm1113, %v1181, 0.0
      %v1410 = vsel %vm1114, %v1182, 0.0
      %v1411 = vsel %vm1115, %v1183, 0.0
      %v1412 = vsel %vm1116, %v1184, 0.0
      %v1413 = vsel %vm1117, %v1185, 0.0
      %v1414 = vsel %vm1118, %v1186, 0.0
      %v1415 = vsel %vm1119, %v1187, 0.0
      %v1416 = vsel %vm1120, %v1188, 0.0
      %v1417 = vsel %vm1121, %v1189, 0.0
      %v1418 = vsel %vm1122, %v1190, 0.0
      %v1419 = vsel %vm1123, %v1191, 0.0
      %v1420 = vsel %vm1124, %v1192, 0.0
      %v1421 = vsel %vm1125, %v1193, 0.0
      %v1422 = vsel %vm1126, %v1194, 0.0
      %v1423 = vsel %vm1127, %v1195, 0.0
      %v1424 = vsel %vm1128, %v1196, 0.0
      %v1425 = vsel %vm1129, %v1197, 0.0
      %v1426 = vsel %vm1130, %v1198, 0.0
      %v1427 = vsel %vm1131, %v1199, 0.0
      %v1428 = vsel %vm1132, %v1200, 0.0
      %v1429 = vsel %vm1133, %v1201, 0.0
      %v1430 = vsel %vm1134, %v1330, 0.0
      %v1431 = vsel %vm1135, %v1331, 0.0
      %v1432 = vsel %vm1136, %v1400, 0.0
      %v1433 = vsel %vm1137, %v1401, 0.0
      %v1434 = vld [vmem:[#allocation2 + $0x111] sm:$0xff]
      %v1435 = vld [vmem:[#allocation2 + $0x119] sm:$0xff]
      %v1436 = vld [vmem:[#allocation2 + $0x112] sm:$0xff]
      %v1437 = vld [vmem:[#allocation2 + $0x11a] sm:$0xff]
      %v1438 = vsel %vm1138, %v1270, 0.0
      %v1439 = vsel %vm1139, %v1271, 0.0
      %v1440 = vsel %vm1140, %v1272, 0.0
      %v1441 = vsel %vm1141, %v1273, 0.0
      %v1442 = vsel %vm1142, %v1274, 0.0
      %v1443 = vsel %vm1143, %v1275, 0.0
      %v1444 = vsel %vm1144, %v1276, 0.0
      %v1445 = vsel %vm1145, %v1277, 0.0
      %v1446 = vsel %vm1146, %v1278, 0.0
      %v1447 = vsel %vm1147, %v1279, 0.0
      %v1448 = vsel %vm1148, %v1280, 0.0
      %v1449 = vsel %vm1149, %v1281, 0.0
      %v1450 = vsel %vm1150, %v1282, 0.0
      %v1451 = vsel %vm1151, %v1283, 0.0
      %v1452 = vsel %vm1152, %v1284, 0.0
      %v1453 = vsel %vm1153, %v1285, 0.0
      %v1454 = vsel %vm1154, %v1286, 0.0
      %v1455 = vsel %vm1155, %v1287, 0.0
      %v1456 = vsel %vm1156, %v1288, 0.0
      %v1457 = vsel %vm1157, %v1289, 0.0
      %v1458 = vsel %vm1158, %v1290, 0.0
      %v1459 = vsel %vm1159, %v1291, 0.0
      %v1460 = vsel %vm1160, %v1292, 0.0
      %v1461 = vsel %vm1161, %v1293, 0.0
      %v1462 = vsel %vm1162, %v1294, 0.0
      %v1463 = vsel %vm1163, %v1295, 0.0
      %v1464 = vsel %vm1164, %v1296, 0.0
      %v1465 = vsel %vm1165, %v1297, 0.0
      %v1466 = vsel %vm1166, %v1366, 0.0
      %v1467 = vsel %vm1167, %v1367, 0.0
      %v1468 = vsel %vm1168, %v1436, 0.0
      %v1469 = vsel %vm1169, %v1437, 0.0
      %1502 = vrot.lane.b32.xlu0 %v1234, 32
      %v1503 = vpop.permute.xlu0 %1502
      %1504 = vrot.lane.b32.xlu0 %v1235, 32
      %v1505 = vpop.permute.xlu0 %1504
      %1506 = vrot.lane.b32.xlu0 %v1236, 32
      %v1507 = vpop.permute.xlu0 %1506
      %1508 = vrot.lane.b32.xlu0 %v1237, 32
      %v1509 = vpop.permute.xlu0 %1508
      %1510 = vrot.lane.b32.xlu0 %v1238, 32
      %v1511 = vpop.permute.xlu0 %1510
      %1512 = vrot.lane.b32.xlu0 %v1239, 32
      %v1513 = vpop.permute.xlu0 %1512
      %1514 = vrot.lane.b32.xlu0 %v1240, 32
      %v1515 = vpop.permute.xlu0 %1514
      %1516 = vrot.lane.b32.xlu0 %v1241, 32
      %v1517 = vpop.permute.xlu0 %1516
      %1518 = vrot.lane.b32.xlu0 %v1242, 32
      %v1519 = vpop.permute.xlu0 %1518
      %1520 = vrot.lane.b32.xlu0 %v1243, 32
      %v1521 = vpop.permute.xlu0 %1520
      %1522 = vrot.lane.b32.xlu0 %v1244, 32
      %v1523 = vpop.permute.xlu0 %1522
      %1524 = vrot.lane.b32.xlu0 %v1245, 32
      %v1525 = vpop.permute.xlu0 %1524
      %1526 = vrot.lane.b32.xlu0 %v1246, 32
      %v1527 = vpop.permute.xlu0 %1526
      %1528 = vrot.lane.b32.xlu0 %v1247, 32
      %v1529 = vpop.permute.xlu0 %1528
      %1530 = vrot.lane.b32.xlu0 %v1248, 32
      %v1531 = vpop.permute.xlu0 %1530
      %1532 = vrot.lane.b32.xlu0 %v1249, 32
      %v1533 = vpop.permute.xlu0 %1532
      %1534 = vrot.lane.b32.xlu0 %v1250, 32
      %v1535 = vpop.permute.xlu0 %1534
      %1536 = vrot.lane.b32.xlu0 %v1251, 32
      %v1537 = vpop.permute.xlu0 %1536
      %1538 = vrot.lane.b32.xlu0 %v1252, 32
      %v1539 = vpop.permute.xlu0 %1538
      %1540 = vrot.lane.b32.xlu0 %v1253, 32
      %v1541 = vpop.permute.xlu0 %1540
      %1542 = vrot.lane.b32.xlu0 %v1254, 32
      %v1543 = vpop.permute.xlu0 %1542
      %1544 = vrot.lane.b32.xlu0 %v1255, 32
      %v1545 = vpop.permute.xlu0 %1544
      %1546 = vrot.lane.b32.xlu0 %v1256, 32
      %v1547 = vpop.permute.xlu0 %1546
      %1548 = vrot.lane.b32.xlu0 %v1257, 32
      %v1549 = vpop.permute.xlu0 %1548
      %1550 = vrot.lane.b32.xlu0 %v1258, 32
      %v1551 = vpop.permute.xlu0 %1550
      %1552 = vrot.lane.b32.xlu0 %v1259, 32
      %v1553 = vpop.permute.xlu0 %1552
      %1554 = vrot.lane.b32.xlu0 %v1260, 32
      %v1555 = vpop.permute.xlu0 %1554
      %1556 = vrot.lane.b32.xlu0 %v1261, 32
      %v1557 = vpop.permute.xlu0 %1556
      %1558 = vrot.lane.b32.xlu0 %v1262, 32
      %v1559 = vpop.permute.xlu0 %1558
      %1560 = vrot.lane.b32.xlu0 %v1263, 32
      %v1561 = vpop.permute.xlu0 %1560
      %1562 = vrot.lane.b32.xlu0 %v1264, 32
      %v1563 = vpop.permute.xlu0 %1562
      %1564 = vrot.lane.b32.xlu0 %v1265, 32
      %v1565 = vpop.permute.xlu0 %1564
      %1630 = vrot.lane.b32.xlu0 %v1298, 64
      %v1631 = vpop.permute.xlu0 %1630
      %1632 = vrot.lane.b32.xlu0 %v1299, 64
      %v1633 = vpop.permute.xlu0 %1632
      %1634 = vrot.lane.b32.xlu0 %v1300, 64
      %v1635 = vpop.permute.xlu0 %1634
      %1636 = vrot.lane.b32.xlu0 %v1301, 64
      %v1637 = vpop.permute.xlu0 %1636
      %1638 = vrot.lane.b32.xlu0 %v1302, 64
      %v1639 = vpop.permute.xlu0 %1638
      %1640 = vrot.lane.b32.xlu0 %v1303, 64
      %v1641 = vpop.permute.xlu0 %1640
      %1642 = vrot.lane.b32.xlu0 %v1304, 64
      %v1643 = vpop.permute.xlu0 %1642
      %1644 = vrot.lane.b32.xlu0 %v1305, 64
      %v1645 = vpop.permute.xlu0 %1644
      %1646 = vrot.lane.b32.xlu0 %v1306, 64
      %v1647 = vpop.permute.xlu0 %1646
      %1648 = vrot.lane.b32.xlu0 %v1307, 64
      %v1649 = vpop.permute.xlu0 %1648
      %1650 = vrot.lane.b32.xlu0 %v1308, 64
      %v1651 = vpop.permute.xlu0 %1650
      %1652 = vrot.lane.b32.xlu0 %v1309, 64
      %v1653 = vpop.permute.xlu0 %1652
      %1654 = vrot.lane.b32.xlu0 %v1310, 64
      %v1655 = vpop.permute.xlu0 %1654
      %1656 = vrot.lane.b32.xlu0 %v1311, 64
      %v1657 = vpop.permute.xlu0 %1656
      %1658 = vrot.lane.b32.xlu0 %v1312, 64
      %v1659 = vpop.permute.xlu0 %1658
      %1660 = vrot.lane.b32.xlu0 %v1313, 64
      %v1661 = vpop.permute.xlu0 %1660
      %1662 = vrot.lane.b32.xlu0 %v1314, 64
      %v1663 = vpop.permute.xlu0 %1662
      %1664 = vrot.lane.b32.xlu0 %v1315, 64
      %v1665 = vpop.permute.xlu0 %1664
      %1666 = vrot.lane.b32.xlu0 %v1316, 64
      %v1667 = vpop.permute.xlu0 %1666
      %1668 = vrot.lane.b32.xlu0 %v1317, 64
      %v1669 = vpop.permute.xlu0 %1668
      %1670 = vrot.lane.b32.xlu0 %v1318, 64
      %v1671 = vpop.permute.xlu0 %1670
      %1672 = vrot.lane.b32.xlu0 %v1319, 64
      %v1673 = vpop.permute.xlu0 %1672
      %1674 = vrot.lane.b32.xlu0 %v1320, 64
      %v1675 = vpop.permute.xlu0 %1674
      %1676 = vrot.lane.b32.xlu0 %v1321, 64
      %v1677 = vpop.permute.xlu0 %1676
      %1678 = vrot.lane.b32.xlu0 %v1322, 64
      %v1679 = vpop.permute.xlu0 %1678
      %1680 = vrot.lane.b32.xlu0 %v1323, 64
      %v1681 = vpop.permute.xlu0 %1680
      %1682 = vrot.lane.b32.xlu0 %v1324, 64
      %v1683 = vpop.permute.xlu0 %1682
      %1684 = vrot.lane.b32.xlu0 %v1325, 64
      %v1685 = vpop.permute.xlu0 %1684
      %1686 = vrot.lane.b32.xlu0 %v1326, 64
      %v1687 = vpop.permute.xlu0 %1686
      %1688 = vrot.lane.b32.xlu0 %v1327, 64
      %v1689 = vpop.permute.xlu0 %1688
      %1690 = vrot.lane.b32.xlu0 %v1328, 64
      %v1691 = vpop.permute.xlu0 %1690
      %1692 = vrot.lane.b32.xlu0 %v1329, 64
      %v1693 = vpop.permute.xlu0 %1692
      %1758 = vrot.lane.b32.xlu0 %v1332, 96
      %v1759 = vpop.permute.xlu0 %1758
      %1760 = vrot.lane.b32.xlu0 %v1333, 96
      %v1761 = vpop.permute.xlu0 %1760
      %1762 = vrot.lane.b32.xlu0 %v1334, 96
      %v1763 = vpop.permute.xlu0 %1762
      %1764 = vrot.lane.b32.xlu0 %v1335, 96
      %v1765 = vpop.permute.xlu0 %1764
      %1766 = vrot.lane.b32.xlu0 %v1336, 96
      %v1767 = vpop.permute.xlu0 %1766
      %1768 = vrot.lane.b32.xlu0 %v1337, 96
      %v1769 = vpop.permute.xlu0 %1768
      %1770 = vrot.lane.b32.xlu0 %v1338, 96
      %v1771 = vpop.permute.xlu0 %1770
      %1772 = vrot.lane.b32.xlu0 %v1339, 96
      %v1773 = vpop.permute.xlu0 %1772
      %1774 = vrot.lane.b32.xlu0 %v1340, 96
      %v1775 = vpop.permute.xlu0 %1774
      %1776 = vrot.lane.b32.xlu0 %v1341, 96
      %v1777 = vpop.permute.xlu0 %1776
      %1778 = vrot.lane.b32.xlu0 %v1342, 96
      %v1779 = vpop.permute.xlu0 %1778
      %1780 = vrot.lane.b32.xlu0 %v1343, 96
      %v1781 = vpop.permute.xlu0 %1780
      %1782 = vrot.lane.b32.xlu0 %v1344, 96
      %v1783 = vpop.permute.xlu0 %1782
      %1784 = vrot.lane.b32.xlu0 %v1345, 96
      %v1785 = vpop.permute.xlu0 %1784
      %1786 = vrot.lane.b32.xlu0 %v1346, 96
      %v1787 = vpop.permute.xlu0 %1786
      %1788 = vrot.lane.b32.xlu0 %v1347, 96
      %v1789 = vpop.permute.xlu0 %1788
      %1790 = vrot.lane.b32.xlu0 %v1348, 96
      %v1791 = vpop.permute.xlu0 %1790
      %1792 = vrot.lane.b32.xlu0 %v1349, 96
      %v1793 = vpop.permute.xlu0 %1792
      %1794 = vrot.lane.b32.xlu0 %v1350, 96
      %v1795 = vpop.permute.xlu0 %1794
      %1796 = vrot.lane.b32.xlu0 %v1351, 96
      %v1797 = vpop.permute.xlu0 %1796
      %1798 = vrot.lane.b32.xlu0 %v1352, 96
      %v1799 = vpop.permute.xlu0 %1798
      %1800 = vrot.lane.b32.xlu0 %v1353, 96
      %v1801 = vpop.permute.xlu0 %1800
      %1802 = vrot.lane.b32.xlu0 %v1354, 96
      %v1803 = vpop.permute.xlu0 %1802
      %1804 = vrot.lane.b32.xlu0 %v1355, 96
      %v1805 = vpop.permute.xlu0 %1804
      %1806 = vrot.lane.b32.xlu0 %v1356, 96
      %v1807 = vpop.permute.xlu0 %1806
      %1808 = vrot.lane.b32.xlu0 %v1357, 96
      %v1809 = vpop.permute.xlu0 %1808
      %1810 = vrot.lane.b32.xlu0 %v1358, 96
      %v1811 = vpop.permute.xlu0 %1810
      %1812 = vrot.lane.b32.xlu0 %v1359, 96
      %v1813 = vpop.permute.xlu0 %1812
      %1814 = vrot.lane.b32.xlu0 %v1360, 96
      %v1815 = vpop.permute.xlu0 %1814
      %1816 = vrot.lane.b32.xlu0 %v1361, 96
      %v1817 = vpop.permute.xlu0 %1816
      %1818 = vrot.lane.b32.xlu0 %v1362, 96
      %v1819 = vpop.permute.xlu0 %1818
      %1820 = vrot.lane.b32.xlu0 %v1363, 96
      %v1821 = vpop.permute.xlu0 %1820
      %1886 = vrot.lane.b32.xlu0 %v1368, 32
      %v1887 = vpop.permute.xlu0 %1886
      %1888 = vrot.lane.b32.xlu0 %v1369, 32
      %v1889 = vpop.permute.xlu0 %1888
      %1890 = vrot.lane.b32.xlu0 %v1370, 32
      %v1891 = vpop.permute.xlu0 %1890
      %1892 = vrot.lane.b32.xlu0 %v1371, 32
      %v1893 = vpop.permute.xlu0 %1892
      %1894 = vrot.lane.b32.xlu0 %v1372, 32
      %v1895 = vpop.permute.xlu0 %1894
      %1896 = vrot.lane.b32.xlu0 %v1373, 32
      %v1897 = vpop.permute.xlu0 %1896
      %1898 = vrot.lane.b32.xlu0 %v1374, 32
      %v1899 = vpop.permute.xlu0 %1898
      %1900 = vrot.lane.b32.xlu0 %v1375, 32
      %v1901 = vpop.permute.xlu0 %1900
      %1902 = vrot.lane.b32.xlu0 %v1376, 32
      %v1903 = vpop.permute.xlu0 %1902
      %1904 = vrot.lane.b32.xlu0 %v1377, 32
      %v1905 = vpop.permute.xlu0 %1904
      %1906 = vrot.lane.b32.xlu0 %v1378, 32
      %v1907 = vpop.permute.xlu0 %1906
      %1908 = vrot.lane.b32.xlu0 %v1379, 32
      %v1909 = vpop.permute.xlu0 %1908
      %1910 = vrot.lane.b32.xlu0 %v1380, 32
      %v1911 = vpop.permute.xlu0 %1910
      %1912 = vrot.lane.b32.xlu0 %v1381, 32
      %v1913 = vpop.permute.xlu0 %1912
      %1914 = vrot.lane.b32.xlu0 %v1382, 32
      %v1915 = vpop.permute.xlu0 %1914
      %1916 = vrot.lane.b32.xlu0 %v1383, 32
      %v1917 = vpop.permute.xlu0 %1916
      %1918 = vrot.lane.b32.xlu0 %v1384, 32
      %v1919 = vpop.permute.xlu0 %1918
      %1920 = vrot.lane.b32.xlu0 %v1385, 32
      %v1921 = vpop.permute.xlu0 %1920
      %1922 = vrot.lane.b32.xlu0 %v1386, 32
      %v1923 = vpop.permute.xlu0 %1922
      %1924 = vrot.lane.b32.xlu0 %v1387, 32
      %v1925 = vpop.permute.xlu0 %1924
      %1926 = vrot.lane.b32.xlu0 %v1388, 32
      %v1927 = vpop.permute.xlu0 %1926
      %1928 = vrot.lane.b32.xlu0 %v1389, 32
      %v1929 = vpop.permute.xlu0 %1928
      %1930 = vrot.lane.b32.xlu0 %v1390, 32
      %v1931 = vpop.permute.xlu0 %1930
      %1932 = vrot.lane.b32.xlu0 %v1391, 32
      %v1933 = vpop.permute.xlu0 %1932
      %1934 = vrot.lane.b32.xlu0 %v1392, 32
      %v1935 = vpop.permute.xlu0 %1934
      %1936 = vrot.lane.b32.xlu0 %v1393, 32
      %v1937 = vpop.permute.xlu0 %1936
      %1938 = vrot.lane.b32.xlu0 %v1394, 32
      %v1939 = vpop.permute.xlu0 %1938
      %1940 = vrot.lane.b32.xlu0 %v1395, 32
      %v1941 = vpop.permute.xlu0 %1940
      %1942 = vrot.lane.b32.xlu0 %v1396, 32
      %v1943 = vpop.permute.xlu0 %1942
      %1944 = vrot.lane.b32.xlu0 %v1397, 32
      %v1945 = vpop.permute.xlu0 %1944
      %1946 = vrot.lane.b32.xlu0 %v1398, 32
      %v1947 = vpop.permute.xlu0 %1946
      %1948 = vrot.lane.b32.xlu0 %v1399, 32
      %v1949 = vpop.permute.xlu0 %1948
      %2014 = vrot.lane.b32.xlu0 %v1402, 64
      %v2015 = vpop.permute.xlu0 %2014
      %2016 = vrot.lane.b32.xlu0 %v1403, 64
      %v2017 = vpop.permute.xlu0 %2016
      %2018 = vrot.lane.b32.xlu0 %v1404, 64
      %v2019 = vpop.permute.xlu0 %2018
      %2020 = vrot.lane.b32.xlu0 %v1405, 64
      %v2021 = vpop.permute.xlu0 %2020
      %2022 = vrot.lane.b32.xlu0 %v1406, 64
      %v2023 = vpop.permute.xlu0 %2022
      %2024 = vrot.lane.b32.xlu0 %v1407, 64
      %v2025 = vpop.permute.xlu0 %2024
      %2026 = vrot.lane.b32.xlu0 %v1408, 64
      %v2027 = vpop.permute.xlu0 %2026
      %2028 = vrot.lane.b32.xlu0 %v1409, 64
      %v2029 = vpop.permute.xlu0 %2028
      %2030 = vrot.lane.b32.xlu0 %v1410, 64
      %v2031 = vpop.permute.xlu0 %2030
      %2032 = vrot.lane.b32.xlu0 %v1411, 64
      %v2033 = vpop.permute.xlu0 %2032
      %2034 = vrot.lane.b32.xlu0 %v1412, 64
      %v2035 = vpop.permute.xlu0 %2034
      %2036 = vrot.lane.b32.xlu0 %v1413, 64
      %v2037 = vpop.permute.xlu0 %2036
      %2038 = vrot.lane.b32.xlu0 %v1414, 64
      %v2039 = vpop.permute.xlu0 %2038
      %2040 = vrot.lane.b32.xlu0 %v1415, 64
      %v2041 = vpop.permute.xlu0 %2040
      %2042 = vrot.lane.b32.xlu0 %v1416, 64
      %v2043 = vpop.permute.xlu0 %2042
      %2044 = vrot.lane.b32.xlu0 %v1417, 64
      %v2045 = vpop.permute.xlu0 %2044
      %2046 = vrot.lane.b32.xlu0 %v1418, 64
      %v2047 = vpop.permute.xlu0 %2046
      %2048 = vrot.lane.b32.xlu0 %v1419, 64
      %v2049 = vpop.permute.xlu0 %2048
      %2050 = vrot.lane.b32.xlu0 %v1420, 64
      %v2051 = vpop.permute.xlu0 %2050
      %2052 = vrot.lane.b32.xlu0 %v1421, 64
      %v2053 = vpop.permute.xlu0 %2052
      %2054 = vrot.lane.b32.xlu0 %v1422, 64
      %v2055 = vpop.permute.xlu0 %2054
      %2056 = vrot.lane.b32.xlu0 %v1423, 64
      %v2057 = vpop.permute.xlu0 %2056
      %2058 = vrot.lane.b32.xlu0 %v1424, 64
      %v2059 = vpop.permute.xlu0 %2058
      %2060 = vrot.lane.b32.xlu0 %v1425, 64
      %v2061 = vpop.permute.xlu0 %2060
      %2062 = vrot.lane.b32.xlu0 %v1426, 64
      %v2063 = vpop.permute.xlu0 %2062
      %2064 = vrot.lane.b32.xlu0 %v1427, 64
      %v2065 = vpop.permute.xlu0 %2064
      %2066 = vrot.lane.b32.xlu0 %v1428, 64
      %v2067 = vpop.permute.xlu0 %2066
      %2068 = vrot.lane.b32.xlu0 %v1429, 64
      %v2069 = vpop.permute.xlu0 %2068
      %2070 = vrot.lane.b32.xlu0 %v1430, 64
      %v2071 = vpop.permute.xlu0 %2070
      %2072 = vrot.lane.b32.xlu0 %v1431, 64
      %v2073 = vpop.permute.xlu0 %2072
      %2074 = vrot.lane.b32.xlu0 %v1432, 64
      %v2075 = vpop.permute.xlu0 %2074
      %2076 = vrot.lane.b32.xlu0 %v1433, 64
      %v2077 = vpop.permute.xlu0 %2076
      %2114 = vrot.lane.b32.xlu0 %v1238, 96
      %v2115 = vpop.permute.xlu0 %2114
      %2116 = vrot.lane.b32.xlu0 %v1239, 96
      %v2117 = vpop.permute.xlu0 %2116
      %2118 = vrot.lane.b32.xlu0 %v1240, 96
      %v2119 = vpop.permute.xlu0 %2118
      %2120 = vrot.lane.b32.xlu0 %v1241, 96
      %v2121 = vpop.permute.xlu0 %2120
      %2122 = vrot.lane.b32.xlu0 %v1242, 96
      %v2123 = vpop.permute.xlu0 %2122
      %2124 = vrot.lane.b32.xlu0 %v1243, 96
      %v2125 = vpop.permute.xlu0 %2124
      %2126 = vrot.lane.b32.xlu0 %v1244, 96
      %v2127 = vpop.permute.xlu0 %2126
      %2128 = vrot.lane.b32.xlu0 %v1245, 96
      %v2129 = vpop.permute.xlu0 %2128
      %2130 = vrot.lane.b32.xlu0 %v1246, 96
      %v2131 = vpop.permute.xlu0 %2130
      %2132 = vrot.lane.b32.xlu0 %v1247, 96
      %v2133 = vpop.permute.xlu0 %2132
      %2134 = vrot.lane.b32.xlu0 %v1248, 96
      %v2135 = vpop.permute.xlu0 %2134
      %2136 = vrot.lane.b32.xlu0 %v1249, 96
      %v2137 = vpop.permute.xlu0 %2136
      %2138 = vrot.lane.b32.xlu0 %v1250, 96
      %v2139 = vpop.permute.xlu0 %2138
      %2140 = vrot.lane.b32.xlu0 %v1251, 96
      %v2141 = vpop.permute.xlu0 %2140
      %2142 = vrot.lane.b32.xlu0 %v1252, 96
      %v2143 = vpop.permute.xlu0 %2142
      %2144 = vrot.lane.b32.xlu0 %v1253, 96
      %v2145 = vpop.permute.xlu0 %2144
      %2146 = vrot.lane.b32.xlu0 %v1254, 96
      %v2147 = vpop.permute.xlu0 %2146
      %2148 = vrot.lane.b32.xlu0 %v1255, 96
      %v2149 = vpop.permute.xlu0 %2148
      %2150 = vrot.lane.b32.xlu0 %v1256, 96
      %v2151 = vpop.permute.xlu0 %2150
      %2152 = vrot.lane.b32.xlu0 %v1257, 96
      %v2153 = vpop.permute.xlu0 %2152
      %2154 = vrot.lane.b32.xlu0 %v1258, 96
      %v2155 = vpop.permute.xlu0 %2154
      %2156 = vrot.lane.b32.xlu0 %v1259, 96
      %v2157 = vpop.permute.xlu0 %2156
      %2158 = vrot.lane.b32.xlu0 %v1260, 96
      %v2159 = vpop.permute.xlu0 %2158
      %2160 = vrot.lane.b32.xlu0 %v1261, 96
      %v2161 = vpop.permute.xlu0 %2160
      %2162 = vrot.lane.b32.xlu0 %v1262, 96
      %v2163 = vpop.permute.xlu0 %2162
      %2164 = vrot.lane.b32.xlu0 %v1263, 96
      %v2165 = vpop.permute.xlu0 %2164
      %2166 = vrot.lane.b32.xlu0 %v1264, 96
      %v2167 = vpop.permute.xlu0 %2166
      %2168 = vrot.lane.b32.xlu0 %v1265, 96
      %v2169 = vpop.permute.xlu0 %2168
      %2170 = vrot.lane.b32.xlu0 %v1364, 96
      %v2171 = vpop.permute.xlu0 %2170
      %2172 = vrot.lane.b32.xlu0 %v1365, 96
      %v2173 = vpop.permute.xlu0 %2172
      %2174 = vrot.lane.b32.xlu0 %v1434, 96
      %v2175 = vpop.permute.xlu0 %2174
      %2176 = vrot.lane.b32.xlu0 %v1435, 96
      %v2177 = vpop.permute.xlu0 %2176
      %v2210 = vsel %vm619, %v1202, %v1503
      %v2211 = vsel %vm619, %v1203, %v1505
      %v2212 = vsel %vm619, %v1204, %v1507
      %v2213 = vsel %vm619, %v1205, %v1509
      %v2214 = vsel %vm619, %v1206, %v1511
      %v2215 = vsel %vm619, %v1207, %v1513
      %v2216 = vsel %vm619, %v1208, %v1515
      %v2217 = vsel %vm619, %v1209, %v1517
      %v2218 = vsel %vm619, %v1210, %v1519
      %v2219 = vsel %vm619, %v1211, %v1521
      %v2220 = vsel %vm619, %v1212, %v1523
      %v2221 = vsel %vm619, %v1213, %v1525
      %v2222 = vsel %vm619, %v1214, %v1527
      %v2223 = vsel %vm619, %v1215, %v1529
      %v2224 = vsel %vm619, %v1216, %v1531
      %v2225 = vsel %vm619, %v1217, %v1533
      %v2226 = vsel %vm619, %v1218, %v1535
      %v2227 = vsel %vm619, %v1219, %v1537
      %v2228 = vsel %vm619, %v1220, %v1539
      %v2229 = vsel %vm619, %v1221, %v1541
      %v2230 = vsel %vm619, %v1222, %v1543
      %v2231 = vsel %vm619, %v1223, %v1545
      %v2232 = vsel %vm619, %v1224, %v1547
      %v2233 = vsel %vm619, %v1225, %v1549
      %v2234 = vsel %vm619, %v1226, %v1551
      %v2235 = vsel %vm619, %v1227, %v1553
      %v2236 = vsel %vm619, %v1228, %v1555
      %v2237 = vsel %vm619, %v1229, %v1557
      %v2238 = vsel %vm619, %v1230, %v1559
      %v2239 = vsel %vm619, %v1231, %v1561
      %v2240 = vsel %vm619, %v1232, %v1563
      %v2241 = vsel %vm619, %v1233, %v1565
      %v2242 = vsel %vm313, %v2210, %v1631
      %v2243 = vsel %vm313, %v2211, %v1633
      %v2244 = vsel %vm313, %v2212, %v1635
      %v2245 = vsel %vm313, %v2213, %v1637
      %v2246 = vsel %vm313, %v2214, %v1639
      %v2247 = vsel %vm313, %v2215, %v1641
      %v2248 = vsel %vm313, %v2216, %v1643
      %v2249 = vsel %vm313, %v2217, %v1645
      %v2250 = vsel %vm313, %v2218, %v1647
      %v2251 = vsel %vm313, %v2219, %v1649
      %v2252 = vsel %vm313, %v2220, %v1651
      %v2253 = vsel %vm313, %v2221, %v1653
      %v2254 = vsel %vm313, %v2222, %v1655
      %v2255 = vsel %vm313, %v2223, %v1657
      %v2256 = vsel %vm313, %v2224, %v1659
      %v2257 = vsel %vm313, %v2225, %v1661
      %v2258 = vsel %vm313, %v2226, %v1663
      %v2259 = vsel %vm313, %v2227, %v1665
      %v2260 = vsel %vm313, %v2228, %v1667
      %v2261 = vsel %vm313, %v2229, %v1669
      %v2262 = vsel %vm313, %v2230, %v1671
      %v2263 = vsel %vm313, %v2231, %v1673
      %v2264 = vsel %vm313, %v2232, %v1675
      %v2265 = vsel %vm313, %v2233, %v1677
      %v2266 = vsel %vm313, %v2234, %v1679
      %v2267 = vsel %vm313, %v2235, %v1681
      %v2268 = vsel %vm313, %v2236, %v1683
      %v2269 = vsel %vm313, %v2237, %v1685
      %v2270 = vsel %vm313, %v2238, %v1687
      %v2271 = vsel %vm313, %v2239, %v1689
      %v2272 = vsel %vm313, %v2240, %v1691
      %v2273 = vsel %vm313, %v2241, %v1693
      %vm2274 = vcmask 785408
      %v2275 = vsel %vm2274, %v2242, %v1759
      %v2276 = vsel %vm2274, %v2243, %v1761
      %v2277 = vsel %vm2274, %v2244, %v1763
      %v2278 = vsel %vm2274, %v2245, %v1765
      %v2279 = vsel %vm2274, %v2246, %v1767
      %v2280 = vsel %vm2274, %v2247, %v1769
      %v2281 = vsel %vm2274, %v2248, %v1771
      %v2282 = vsel %vm2274, %v2249, %v1773
      %v2283 = vsel %vm2274, %v2250, %v1775
      %v2284 = vsel %vm2274, %v2251, %v1777
      %v2285 = vsel %vm2274, %v2252, %v1779
      %v2286 = vsel %vm2274, %v2253, %v1781
      %v2287 = vsel %vm2274, %v2254, %v1783
      %v2288 = vsel %vm2274, %v2255, %v1785
      %v2289 = vsel %vm2274, %v2256, %v1787
      %v2290 = vsel %vm2274, %v2257, %v1789
      %v2291 = vsel %vm2274, %v2258, %v1791
      %v2292 = vsel %vm2274, %v2259, %v1793
      %v2293 = vsel %vm2274, %v2260, %v1795
      %v2294 = vsel %vm2274, %v2261, %v1797
      %v2295 = vsel %vm2274, %v2262, %v1799
      %v2296 = vsel %vm2274, %v2263, %v1801
      %v2297 = vsel %vm2274, %v2264, %v1803
      %v2298 = vsel %vm2274, %v2265, %v1805
      %v2299 = vsel %vm2274, %v2266, %v1807
      %v2300 = vsel %vm2274, %v2267, %v1809
      %v2301 = vsel %vm2274, %v2268, %v1811
      %v2302 = vsel %vm2274, %v2269, %v1813
      %v2303 = vsel %vm2274, %v2270, %v1815
      %v2304 = vsel %vm2274, %v2271, %v1817
      %v2305 = vsel %vm2274, %v2272, %v1819
      %v2306 = vsel %vm2274, %v2273, %v1821
      %v2307 = vsel %vm619, %v1236, %v1887
      %v2308 = vsel %vm619, %v1237, %v1889
      %v2309 = vsel %vm619, %v1238, %v1891
      %v2310 = vsel %vm619, %v1239, %v1893
      %v2311 = vsel %vm619, %v1240, %v1895
      %v2312 = vsel %vm619, %v1241, %v1897
      %v2313 = vsel %vm619, %v1242, %v1899
      %v2314 = vsel %vm619, %v1243, %v1901
      %v2315 = vsel %vm619, %v1244, %v1903
      %v2316 = vsel %vm619, %v1245, %v1905
      %v2317 = vsel %vm619, %v1246, %v1907
      %v2318 = vsel %vm619, %v1247, %v1909
      %v2319 = vsel %vm619, %v1248, %v1911
      %v2320 = vsel %vm619, %v1249, %v1913
      %v2321 = vsel %vm619, %v1250, %v1915
      %v2322 = vsel %vm619, %v1251, %v1917
      %v2323 = vsel %vm619, %v1252, %v1919
      %v2324 = vsel %vm619, %v1253, %v1921
      %v2325 = vsel %vm619, %v1254, %v1923
      %v2326 = vsel %vm619, %v1255, %v1925
      %v2327 = vsel %vm619, %v1256, %v1927
      %v2328 = vsel %vm619, %v1257, %v1929
      %v2329 = vsel %vm619, %v1258, %v1931
      %v2330 = vsel %vm619, %v1259, %v1933
      %v2331 = vsel %vm619, %v1260, %v1935
      %v2332 = vsel %vm619, %v1261, %v1937
      %v2333 = vsel %vm619, %v1262, %v1939
      %v2334 = vsel %vm619, %v1263, %v1941
      %v2335 = vsel %vm619, %v1264, %v1943
      %v2336 = vsel %vm619, %v1265, %v1945
      %v2337 = vsel %vm619, %v1364, %v1947
      %v2338 = vsel %vm619, %v1365, %v1949
      %v2339 = vsel %vm313, %v2307, %v2015
      %v2340 = vsel %vm313, %v2308, %v2017
      %v2341 = vsel %vm313, %v2309, %v2019
      %v2342 = vsel %vm313, %v2310, %v2021
      %v2343 = vsel %vm313, %v2311, %v2023
      %v2344 = vsel %vm313, %v2312, %v2025
      %v2345 = vsel %vm313, %v2313, %v2027
      %v2346 = vsel %vm313, %v2314, %v2029
      %v2347 = vsel %vm313, %v2315, %v2031
      %v2348 = vsel %vm313, %v2316, %v2033
      %v2349 = vsel %vm313, %v2317, %v2035
      %v2350 = vsel %vm313, %v2318, %v2037
      %v2351 = vsel %vm313, %v2319, %v2039
      %v2352 = vsel %vm313, %v2320, %v2041
      %v2353 = vsel %vm313, %v2321, %v2043
      %v2354 = vsel %vm313, %v2322, %v2045
      %v2355 = vsel %vm313, %v2323, %v2047
      %v2356 = vsel %vm313, %v2324, %v2049
      %v2357 = vsel %vm313, %v2325, %v2051
      %v2358 = vsel %vm313, %v2326, %v2053
      %v2359 = vsel %vm313, %v2327, %v2055
      %v2360 = vsel %vm313, %v2328, %v2057
      %v2361 = vsel %vm313, %v2329, %v2059
      %v2362 = vsel %vm313, %v2330, %v2061
      %v2363 = vsel %vm313, %v2331, %v2063
      %v2364 = vsel %vm313, %v2332, %v2065
      %v2365 = vsel %vm313, %v2333, %v2067
      %v2366 = vsel %vm313, %v2334, %v2069
      %v2367 = vsel %vm313, %v2335, %v2071
      %v2368 = vsel %vm313, %v2336, %v2073
      %v2369 = vsel %vm313, %v2337, %v2075
      %v2370 = vsel %vm313, %v2338, %v2077
      %v2371 = vsel %vm2274, %v2339, %v2115
      %v2372 = vsel %vm2274, %v2340, %v2117
      %v2373 = vsel %vm2274, %v2341, %v2119
      %v2374 = vsel %vm2274, %v2342, %v2121
      %v2375 = vsel %vm2274, %v2343, %v2123
      %v2376 = vsel %vm2274, %v2344, %v2125
      %v2377 = vsel %vm2274, %v2345, %v2127
      %v2378 = vsel %vm2274, %v2346, %v2129
      %v2379 = vsel %vm2274, %v2347, %v2131
      %v2380 = vsel %vm2274, %v2348, %v2133
      %v2381 = vsel %vm2274, %v2349, %v2135
      %v2382 = vsel %vm2274, %v2350, %v2137
      %v2383 = vsel %vm2274, %v2351, %v2139
      %v2384 = vsel %vm2274, %v2352, %v2141
      %v2385 = vsel %vm2274, %v2353, %v2143
      %v2386 = vsel %vm2274, %v2354, %v2145
      %v2387 = vsel %vm2274, %v2355, %v2147
      %v2388 = vsel %vm2274, %v2356, %v2149
      %v2389 = vsel %vm2274, %v2357, %v2151
      %v2390 = vsel %vm2274, %v2358, %v2153
      %v2391 = vsel %vm2274, %v2359, %v2155
      %v2392 = vsel %vm2274, %v2360, %v2157
      %v2393 = vsel %vm2274, %v2361, %v2159
      %v2394 = vsel %vm2274, %v2362, %v2161
      %v2395 = vsel %vm2274, %v2363, %v2163
      %v2396 = vsel %vm2274, %v2364, %v2165
      %v2397 = vsel %vm2274, %v2365, %v2167
      %v2398 = vsel %vm2274, %v2366, %v2169
      %v2399 = vsel %vm2274, %v2367, %v2171
      %v2400 = vsel %vm2274, %v2368, %v2173
      %v2401 = vsel %vm2274, %v2369, %v2175
      %v2402 = vsel %vm2274, %v2370, %v2177
      %v2403 = vpack.c.bf16 %v2276, %v2275
      %v2404 = vpack.c.bf16 %v2372, %v2371
      %v2405 = vpack.c.bf16 %v1439, %v1438
      %v2406 = vpack.c.bf16 %v2278, %v2277
      %v2407 = vpack.c.bf16 %v2374, %v2373
      %v2408 = vpack.c.bf16 %v1441, %v1440
      %v2409 = vpack.c.bf16 %v2280, %v2279
      %v2410 = vpack.c.bf16 %v2376, %v2375
      %v2411 = vpack.c.bf16 %v1443, %v1442
      %v2412 = vpack.c.bf16 %v2282, %v2281
      %v2413 = vpack.c.bf16 %v2378, %v2377
      %v2414 = vpack.c.bf16 %v1445, %v1444
      %v2415 = vpack.c.bf16 %v2284, %v2283
      %v2416 = vpack.c.bf16 %v2380, %v2379
      %v2417 = vpack.c.bf16 %v1447, %v1446
      %v2418 = vpack.c.bf16 %v2286, %v2285
      %v2419 = vpack.c.bf16 %v2382, %v2381
      %v2420 = vpack.c.bf16 %v1449, %v1448
      %v2421 = vpack.c.bf16 %v2288, %v2287
      %v2422 = vpack.c.bf16 %v2384, %v2383
      %v2423 = vpack.c.bf16 %v1451, %v1450
      %v2424 = vpack.c.bf16 %v2290, %v2289
      %v2425 = vpack.c.bf16 %v2386, %v2385
      %v2426 = vpack.c.bf16 %v1453, %v1452
      %v2427 = vpack.c.bf16 %v2292, %v2291
      %v2428 = vpack.c.bf16 %v2388, %v2387
      %v2429 = vpack.c.bf16 %v1455, %v1454
      %v2430 = vpack.c.bf16 %v2294, %v2293
      %v2431 = vpack.c.bf16 %v2390, %v2389
      %v2432 = vpack.c.bf16 %v1457, %v1456
      %v2433 = vpack.c.bf16 %v2296, %v2295
      %v2434 = vpack.c.bf16 %v2392, %v2391
      %v2435 = vpack.c.bf16 %v1459, %v1458
      %v2436 = vpack.c.bf16 %v2298, %v2297
      %v2437 = vpack.c.bf16 %v2394, %v2393
      %v2438 = vpack.c.bf16 %v1461, %v1460
      %v2439 = vpack.c.bf16 %v2300, %v2299
      %v2440 = vpack.c.bf16 %v2396, %v2395
      %v2441 = vpack.c.bf16 %v1463, %v1462
      %v2442 = vpack.c.bf16 %v2302, %v2301
      %v2443 = vpack.c.bf16 %v2398, %v2397
      %v2444 = vpack.c.bf16 %v1465, %v1464
      %v2445 = vpack.c.bf16 %v2304, %v2303
      %v2446 = vpack.c.bf16 %v2400, %v2399
      %v2447 = vpack.c.bf16 %v1467, %v1466
      %v2448 = vpack.c.bf16 %v2306, %v2305
      %v2449 = vpack.c.bf16 %v2402, %v2401
      %v2450 = vpack.c.bf16 %v1469, %v1468
      %v2451 = vld [vmem:[%s3] sm:$0xf]
      %v2452 = vld [vmem:[%s3 + $0x4] sm:$0xf]
      %v2453 = vld [vmem:[%s3 + $0x8] sm:$0xf]
      %v2454 = vld [vmem:[%s3 + $0xc] sm:$0xf]
      %v2455 = vld [vmem:[%s3 + $0x10] sm:$0xf]
      %v2456 = vld [vmem:[%s3 + $0x14] sm:$0xf]
      %v2457 = vld [vmem:[%s3 + $0x18] sm:$0xf]
      %v2458 = vld [vmem:[%s3 + $0x1c] sm:$0xf]
      %v2459 = vld [vmem:[%s3 + $0x20] sm:$0xf]
      %v2460 = vld [vmem:[%s3 + $0x24] sm:$0xf]
      %v2461 = vld [vmem:[%s3 + $0x28] sm:$0xf]
      %v2462 = vld [vmem:[%s3 + $0x2c] sm:$0xf]
      %v2463 = vld [vmem:[%s3 + $0x30] sm:$0xf]
      %v2464 = vld [vmem:[%s3 + $0x34] sm:$0xf]
      %v2465 = vld [vmem:[%s3 + $0x38] sm:$0xf]
      %v2466 = vld [vmem:[%s3 + $0x3c] sm:$0xf]
      %v2467 = vld [vmem:[%s3 + $0x40] sm:$0xf]
      %v2468 = vld [vmem:[%s3 + $0x44] sm:$0xf]
      %v2469 = vld [vmem:[%s3 + $0x48] sm:$0xf]
      %v2470 = vld [vmem:[%s3 + $0x4c] sm:$0xf]
      %v2471 = vld [vmem:[%s3 + $0x50] sm:$0xf]
      %v2472 = vld [vmem:[%s3 + $0x54] sm:$0xf]
      %v2473 = vld [vmem:[%s3 + $0x58] sm:$0xf]
      %v2474 = vld [vmem:[%s3 + $0x5c] sm:$0xf]
      %v2475 = vld [vmem:[%s3 + $0x60] sm:$0xf]
      %v2476 = vld [vmem:[%s3 + $0x64] sm:$0xf]
      %v2477 = vld [vmem:[%s3 + $0x68] sm:$0xf]
      %v2478 = vld [vmem:[%s3 + $0x6c] sm:$0xf]
      %v2479 = vld [vmem:[%s3 + $0x70] sm:$0xf]
      %v2480 = vld [vmem:[%s3 + $0x74] sm:$0xf]
      %v2481 = vld [vmem:[%s3 + $0x78] sm:$0xf]
      %v2482 = vld [vmem:[%s3 + $0x7c] sm:$0xf]
      %v2483 = vld [vmem:[%s3 + $0x80] sm:$0xf]
      %v2484 = vld [vmem:[%s3 + $0x84] sm:$0xf]
      %v2485 = vld [vmem:[%s3 + $0x88] sm:$0xf]
      %v2486 = vld [vmem:[%s3 + $0x8c] sm:$0xf]
      %v2487 = vld [vmem:[%s4] sm:$0x1]
      %v2489 = vlaneseq
      %v2490 = vshrl.u32 %v2489, 7
      %v2491 = vsub.s32 0, %v2490
      %v2492 = vrot.slane %v2487, %v2491
      %v2530 = vunpack.c.l.b16 %v2451
      %v2531 = vunpack.c.l.b16 %v2452
      %v2532 = vunpack.c.l.b16 %v2453
      %v2533 = vunpack.c.l.b16 %v2454
      %v2534 = vunpack.c.l.b16 %v2455
      %v2535 = vunpack.c.l.b16 %v2456
      %v2536 = vunpack.c.l.b16 %v2457
      %v2537 = vunpack.c.l.b16 %v2458
      %v2538 = vunpack.c.l.b16 %v2459
      %v2539 = vunpack.c.l.b16 %v2460
      %v2540 = vunpack.c.l.b16 %v2461
      %v2541 = vunpack.c.l.b16 %v2462
      %v2542 = vunpack.c.l.b16 %v2463
      %v2543 = vunpack.c.l.b16 %v2464
      %v2544 = vunpack.c.l.b16 %v2465
      %v2545 = vunpack.c.l.b16 %v2466
      %v2546 = vunpack.c.l.b16 %v2467
      %v2547 = vunpack.c.l.b16 %v2468
      %v2548 = vunpack.c.l.b16 %v2469
      %v2549 = vunpack.c.l.b16 %v2470
      %v2550 = vunpack.c.l.b16 %v2471
      %v2551 = vunpack.c.l.b16 %v2472
      %v2552 = vunpack.c.l.b16 %v2473
      %v2553 = vunpack.c.l.b16 %v2474
      %v2554 = vunpack.c.l.b16 %v2475
      %v2555 = vunpack.c.l.b16 %v2476
      %v2556 = vunpack.c.l.b16 %v2477
      %v2557 = vunpack.c.l.b16 %v2478
      %v2558 = vunpack.c.l.b16 %v2479
      %v2559 = vunpack.c.l.b16 %v2480
      %v2560 = vunpack.c.l.b16 %v2481
      %v2561 = vunpack.c.l.b16 %v2482
      %v2562 = vunpack.c.l.b16 %v2483
      %v2563 = vunpack.c.l.b16 %v2484
      %v2564 = vunpack.c.l.b16 %v2485
      %v2565 = vunpack.c.l.b16 %v2486
      %v2566 = vpack.c.b16 %v2531, %v2530
      %v2567 = vpack.c.b16 %v2533, %v2532
      %v2568 = vpack.c.b16 %v2535, %v2534
      %v2569 = vpack.c.b16 %v2537, %v2536
      %v2570 = vpack.c.b16 %v2539, %v2538
      %v2571 = vpack.c.b16 %v2541, %v2540
      %v2572 = vpack.c.b16 %v2543, %v2542
      %v2573 = vpack.c.b16 %v2545, %v2544
      %v2574 = vpack.c.b16 %v2547, %v2546
      %v2575 = vpack.c.b16 %v2549, %v2548
      %v2576 = vpack.c.b16 %v2551, %v2550
      %v2577 = vpack.c.b16 %v2553, %v2552
      %v2578 = vpack.c.b16 %v2555, %v2554
      %v2579 = vpack.c.b16 %v2557, %v2556
      %v2580 = vpack.c.b16 %v2559, %v2558
      %v2581 = vpack.c.b16 %v2561, %v2560
      %v2582 = vpack.c.b16 %v2563, %v2562
      %v2583 = vpack.c.b16 %v2565, %v2564
      %v2603 = vsel %vm619, %v2405, 0
      %v2606 = vsel %vm619, %v2408, 0
      %v2609 = vsel %vm619, %v2411, 0
      %v2612 = vsel %vm619, %v2414, 0
      %v2615 = vsel %vm619, %v2417, 0
      %v2618 = vsel %vm619, %v2420, 0
      %v2621 = vsel %vm619, %v2423, 0
      %v2624 = vsel %vm619, %v2426, 0
      %v2627 = vsel %vm619, %v2429, 0
      %v2630 = vsel %vm619, %v2432, 0
      %v2633 = vsel %vm619, %v2435, 0
      %v2636 = vsel %vm619, %v2438, 0
      %v2639 = vsel %vm619, %v2441, 0
      %v2642 = vsel %vm619, %v2444, 0
      %v2645 = vsel %vm619, %v2447, 0
      %v2648 = vsel %vm619, %v2450, 0
      %2650 = vmatprep.subr.bf16.mxu0 0
      %2651 = vmatpush1.bf16.msra.mxu0 %v2566
      %2652 = vmatprep.subr.bf16.mxu0 0
      %2653 = vmatpush1.bf16.msra.mxu0 %v2567
      %2654 = vmatprep.subr.bf16.mxu0 0
      %2655 = vmatpush1.bf16.msra.mxu0 %v2568
      %2656 = vmatprep.subr.bf16.mxu0 0
      %2657 = vmatpush1.bf16.msra.mxu0 %v2569
      %2658 = vmatprep.subr.bf16.mxu0 0
      %2659 = vmatpush1.bf16.msra.mxu0 %v2570
      %2660 = vmatprep.subr.bf16.mxu0 0
      %2661 = vmatpush1.bf16.msra.mxu0 %v2571
      %2662 = vmatprep.subr.bf16.mxu0 0
      %2663 = vmatpush1.bf16.msra.mxu0 %v2572
      %2664 = vmatprep.subr.bf16.mxu0 0
      %2665 = vmatpush1.bf16.msra.mxu0 %v2573
      %2666 = vmatprep.subr.bf16.mxu0 0
      %2667 = vmatpush1.bf16.msra.mxu0 %v2574
      %2668 = vmatprep.subr.bf16.mxu0 0
      %2669 = vmatpush1.bf16.msra.mxu0 %v2575
      %2670 = vmatprep.subr.bf16.mxu0 0
      %2671 = vmatpush1.bf16.msra.mxu0 %v2576
      %2672 = vmatprep.subr.bf16.mxu0 0
      %2673 = vmatpush1.bf16.msra.mxu0 %v2577
      %2674 = vmatprep.subr.bf16.mxu0 0
      %2675 = vmatpush1.bf16.msra.mxu0 %v2578
      %2676 = vmatprep.subr.bf16.mxu0 0
      %2677 = vmatpush1.bf16.msra.mxu0 %v2579
      %2678 = vmatprep.subr.bf16.mxu0 0
      %2679 = vmatpush1.bf16.msra.mxu0 %v2580
      %2680 = vmatprep.subr.bf16.mxu0 0
      %2681 = vmatpush1.bf16.msra.mxu0 %v2581
      %2682 = vmatprep.mubr.bf16.mxu0 %v2404
      %2683 = vmatmul.mubr.bf16.gmra.mrb[0].mxu0 %v2403
      %v2684 = vpop.f32.mrb[0].mxu0
      %v2685 = vadd.f32 %v2492, %v2684
      %v2686 = vpop.f32.mrb[0].mxu0
      %v2687 = vpop.f32.mrb[0].mxu0
      %v2688 = vadd.f32 %v2492, %v2687
      %v2689 = vpop.f32.mrb[0].mxu0
      %2690 = vmatprep.mubr.bf16.mxu0 %v2407
      %2691 = vmatmul.mubr.bf16.gmra.mrb[0].mxu0 %v2406
      %v2692 = vpop.f32.mrb[0].mxu0
      %v2693 = vadd.f32 %v2492, %v2692
      %v2694 = vpop.f32.mrb[0].mxu0
      %v2695 = vpop.f32.mrb[0].mxu0
      %v2696 = vadd.f32 %v2492, %v2695
      %v2697 = vpop.f32.mrb[0].mxu0
      %2698 = vmatprep.mubr.bf16.mxu0 %v2410
      %2699 = vmatmul.mubr.bf16.gmra.mrb[0].mxu0 %v2409
      %v2700 = vpop.f32.mrb[0].mxu0
      %v2701 = vadd.f32 %v2492, %v2700
      %v2702 = vpop.f32.mrb[0].mxu0
      %v2703 = vpop.f32.mrb[0].mxu0
      %v2704 = vadd.f32 %v2492, %v2703
      %v2705 = vpop.f32.mrb[0].mxu0
      %2706 = vmatprep.mubr.bf16.mxu0 %v2413
      %2707 = vmatmul.mubr.bf16.gmra.mrb[0].mxu0 %v2412
      %v2708 = vpop.f32.mrb[0].mxu0
      %v2709 = vadd.f32 %v2492, %v2708
      %v2710 = vpop.f32.mrb[0].mxu0
      %v2711 = vpop.f32.mrb[0].mxu0
      %v2712 = vadd.f32 %v2492, %v2711
      %v2713 = vpop.f32.mrb[0].mxu0
      %2714 = vmatprep.mubr.bf16.mxu0 %v2416
      %2715 = vmatmul.mubr.bf16.gmra.mrb[0].mxu0 %v2415
      %v2716 = vpop.f32.mrb[0].mxu0
      %v2717 = vadd.f32 %v2492, %v2716
      %v2718 = vpop.f32.mrb[0].mxu0
      %v2719 = vpop.f32.mrb[0].mxu0
      %v2720 = vadd.f32 %v2492, %v2719
      %v2721 = vpop.f32.mrb[0].mxu0
      %2722 = vmatprep.mubr.bf16.mxu0 %v2419
      %2723 = vmatmul.mubr.bf16.gmra.mrb[0].mxu0 %v2418
      %v2724 = vpop.f32.mrb[0].mxu0
      %v2725 = vadd.f32 %v2492, %v2724
      %v2726 = vpop.f32.mrb[0].mxu0
      %v2727 = vpop.f32.mrb[0].mxu0
      %v2728 = vadd.f32 %v2492, %v2727
      %v2729 = vpop.f32.mrb[0].mxu0
      %2730 = vmatprep.mubr.bf16.mxu0 %v2422
      %2731 = vmatmul.mubr.bf16.gmra.mrb[0].mxu0 %v2421
      %v2732 = vpop.f32.mrb[0].mxu0
      %v2733 = vadd.f32 %v2492, %v2732
      %v2734 = vpop.f32.mrb[0].mxu0
      %v2735 = vpop.f32.mrb[0].mxu0
      %v2736 = vadd.f32 %v2492, %v2735
      %v2737 = vpop.f32.mrb[0].mxu0
      %2738 = vmatprep.mubr.bf16.mxu0 %v2425
      %2739 = vmatmul.mubr.bf16.gmra.mrb[0].mxu0 %v2424
      %v2740 = vpop.f32.mrb[0].mxu0
      %v2741 = vadd.f32 %v2492, %v2740
      %v2742 = vpop.f32.mrb[0].mxu0
      %v2743 = vpop.f32.mrb[0].mxu0
      %v2744 = vadd.f32 %v2492, %v2743
      %v2745 = vpop.f32.mrb[0].mxu0
      %2746 = vmatprep.mubr.bf16.mxu0 %v2428
      %2747 = vmatmul.mubr.bf16.gmra.mrb[0].mxu0 %v2427
      %v2748 = vpop.f32.mrb[0].mxu0
      %v2749 = vadd.f32 %v2492, %v2748
      %v2750 = vpop.f32.mrb[0].mxu0
      %v2751 = vpop.f32.mrb[0].mxu0
      %v2752 = vadd.f32 %v2492, %v2751
      %v2753 = vpop.f32.mrb[0].mxu0
      %2754 = vmatprep.mubr.bf16.mxu0 %v2431
      %2755 = vmatmul.mubr.bf16.gmra.mrb[0].mxu0 %v2430
      %v2756 = vpop.f32.mrb[0].mxu0
      %v2757 = vadd.f32 %v2492, %v2756
      %v2758 = vpop.f32.mrb[0].mxu0
      %v2759 = vpop.f32.mrb[0].mxu0
      %v2760 = vadd.f32 %v2492, %v2759
      %v2761 = vpop.f32.mrb[0].mxu0
      %2762 = vmatprep.mubr.bf16.mxu0 %v2434
      %2763 = vmatmul.mubr.bf16.gmra.mrb[0].mxu0 %v2433
      %v2764 = vpop.f32.mrb[0].mxu0
      %v2765 = vadd.f32 %v2492, %v2764
      %v2766 = vpop.f32.mrb[0].mxu0
      %v2767 = vpop.f32.mrb[0].mxu0
      %v2768 = vadd.f32 %v2492, %v2767
      %v2769 = vpop.f32.mrb[0].mxu0
      %2770 = vmatprep.mubr.bf16.mxu0 %v2437
      %2771 = vmatmul.mubr.bf16.gmra.mrb[0].mxu0 %v2436
      %v2772 = vpop.f32.mrb[0].mxu0
      %v2773 = vadd.f32 %v2492, %v2772
      %v2774 = vpop.f32.mrb[0].mxu0
      %v2775 = vpop.f32.mrb[0].mxu0
      %v2776 = vadd.f32 %v2492, %v2775
      %v2777 = vpop.f32.mrb[0].mxu0
      %2778 = vmatprep.mubr.bf16.mxu0 %v2440
      %2779 = vmatmul.mubr.bf16.gmra.mrb[0].mxu0 %v2439
      %v2780 = vpop.f32.mrb[0].mxu0
      %v2781 = vadd.f32 %v2492, %v2780
      %v2782 = vpop.f32.mrb[0].mxu0
      %v2783 = vpop.f32.mrb[0].mxu0
      %v2784 = vadd.f32 %v2492, %v2783
      %v2785 = vpop.f32.mrb[0].mxu0
      %2786 = vmatprep.mubr.bf16.mxu0 %v2443
      %2787 = vmatmul.mubr.bf16.gmra.mrb[0].mxu0 %v2442
      %v2788 = vpop.f32.mrb[0].mxu0
      %v2789 = vadd.f32 %v2492, %v2788
      %v2790 = vpop.f32.mrb[0].mxu0
      %v2791 = vpop.f32.mrb[0].mxu0
      %v2792 = vadd.f32 %v2492, %v2791
      %v2793 = vpop.f32.mrb[0].mxu0
      %2794 = vmatprep.mubr.bf16.mxu0 %v2446
      %2795 = vmatmul.mubr.bf16.gmra.mrb[0].mxu0 %v2445
      %v2796 = vpop.f32.mrb[0].mxu0
      %v2797 = vadd.f32 %v2492, %v2796
      %v2798 = vpop.f32.mrb[0].mxu0
      %v2799 = vpop.f32.mrb[0].mxu0
      %v2800 = vadd.f32 %v2492, %v2799
      %v2801 = vpop.f32.mrb[0].mxu0
      %2802 = vmatprep.mubr.bf16.mxu0 %v2449
      %2803 = vmatmul.mubr.bf16.gmra.mrb[0].mxu0 %v2448
      %v2804 = vpop.f32.mrb[0].mxu0
      %v2805 = vadd.f32 %v2492, %v2804
      %v2806 = vpop.f32.mrb[0].mxu0
      %v2807 = vpop.f32.mrb[0].mxu0
      %v2808 = vadd.f32 %v2492, %v2807
      %v2809 = vpop.f32.mrb[0].mxu0
      %2810 = vdwg.mxu0
      %2811 = vmatprep.subr.bf16.mxu0 0
      %2812 = vmatpush1.bf16.msra.mxu0 %v2582
      %2813 = vmatprep.subr.bf16.mxu0 0
      %2814 = vmatpush1.bf16.msra.mxu0 %v2583
      %2815 = vmatprep.subr.bf16.mxu0 0
      %2816 = vmatpush1.bf16.msra.mxu0 0
      %2817 = vmatprep.subr.bf16.mxu0 0
      %2818 = vmatpush1.bf16.msra.mxu0 0
      %2819 = vmatprep.subr.bf16.mxu0 0
      %2820 = vmatpush1.bf16.msra.mxu0 0
      %2821 = vmatprep.subr.bf16.mxu0 0
      %2822 = vmatpush1.bf16.msra.mxu0 0
      %2823 = vmatprep.subr.bf16.mxu0 0
      %2824 = vmatpush1.bf16.msra.mxu0 0
      %2825 = vmatprep.subr.bf16.mxu0 0
      %2826 = vmatpush1.bf16.msra.mxu0 0
      %2827 = vmatprep.subr.bf16.mxu0 0
      %2828 = vmatpush1.bf16.msra.mxu0 0
      %2829 = vmatprep.subr.bf16.mxu0 0
      %2830 = vmatpush1.bf16.msra.mxu0 0
      %2831 = vmatprep.subr.bf16.mxu0 0
      %2832 = vmatpush1.bf16.msra.mxu0 0
      %2833 = vmatprep.subr.bf16.mxu0 0
      %2834 = vmatpush1.bf16.msra.mxu0 0
      %2835 = vmatprep.subr.bf16.mxu0 0
      %2836 = vmatpush1.bf16.msra.mxu0 0
      %2837 = vmatprep.subr.bf16.mxu0 0
      %2838 = vmatpush1.bf16.msra.mxu0 0
      %2839 = vmatprep.subr.bf16.mxu0 0
      %2840 = vmatpush1.bf16.msra.mxu0 0
      %2841 = vmatprep.subr.bf16.mxu0 0
      %2842 = vmatpush1.bf16.msra.mxu0 0
      %2843 = vmatprep.mubr.bf16.mxu0 0
      %2844 = vmatmul.mubr.bf16.gmra.mrb[0].mxu0 %v2603
      %v2845 = vpop.f32.mrb[0].mxu0
      %v2846 = vadd.f32 %v2685, %v2845
      %v2847 = vpop.f32.mrb[0].mxu0
      %v2848 = vpop.f32.mrb[0].mxu0
      %v2849 = vadd.f32 %v2688, %v2848
      %v2850 = vpop.f32.mrb[0].mxu0
      %2851 = vmatprep.mubr.bf16.mxu0 0
      %2852 = vmatmul.mubr.bf16.gmra.mrb[0].mxu0 %v2606
      %v2853 = vpop.f32.mrb[0].mxu0
      %v2854 = vadd.f32 %v2693, %v2853
      %v2855 = vpop.f32.mrb[0].mxu0
      %v2856 = vpop.f32.mrb[0].mxu0
      %v2857 = vadd.f32 %v2696, %v2856
      %v2858 = vpop.f32.mrb[0].mxu0
      %2859 = vmatprep.mubr.bf16.mxu0 0
      %2860 = vmatmul.mubr.bf16.gmra.mrb[0].mxu0 %v2609
      %v2861 = vpop.f32.mrb[0].mxu0
      %v2862 = vadd.f32 %v2701, %v2861
      %v2863 = vpop.f32.mrb[0].mxu0
      %v2864 = vpop.f32.mrb[0].mxu0
      %v2865 = vadd.f32 %v2704, %v2864
      %v2866 = vpop.f32.mrb[0].mxu0
      %2867 = vmatprep.mubr.bf16.mxu0 0
      %2868 = vmatmul.mubr.bf16.gmra.mrb[0].mxu0 %v2612
      %v2869 = vpop.f32.mrb[0].mxu0
      %v2870 = vadd.f32 %v2709, %v2869
      %v2871 = vpop.f32.mrb[0].mxu0
      %v2872 = vpop.f32.mrb[0].mxu0
      %v2873 = vadd.f32 %v2712, %v2872
      %v2874 = vpop.f32.mrb[0].mxu0
      %2875 = vmatprep.mubr.bf16.mxu0 0
      %2876 = vmatmul.mubr.bf16.gmra.mrb[0].mxu0 %v2615
      %v2877 = vpop.f32.mrb[0].mxu0
      %v2878 = vadd.f32 %v2717, %v2877
      %v2879 = vpop.f32.mrb[0].mxu0
      %v2880 = vpop.f32.mrb[0].mxu0
      %v2881 = vadd.f32 %v2720, %v2880
      %v2882 = vpop.f32.mrb[0].mxu0
      %2883 = vmatprep.mubr.bf16.mxu0 0
      %2884 = vmatmul.mubr.bf16.gmra.mrb[0].mxu0 %v2618
      %v2885 = vpop.f32.mrb[0].mxu0
      %v2886 = vadd.f32 %v2725, %v2885
      %v2887 = vpop.f32.mrb[0].mxu0
      %v2888 = vpop.f32.mrb[0].mxu0
      %v2889 = vadd.f32 %v2728, %v2888
      %v2890 = vpop.f32.mrb[0].mxu0
      %2891 = vmatprep.mubr.bf16.mxu0 0
      %2892 = vmatmul.mubr.bf16.gmra.mrb[0].mxu0 %v2621
      %v2893 = vpop.f32.mrb[0].mxu0
      %v2894 = vadd.f32 %v2733, %v2893
      %v2895 = vpop.f32.mrb[0].mxu0
      %v2896 = vpop.f32.mrb[0].mxu0
      %v2897 = vadd.f32 %v2736, %v2896
      %v2898 = vpop.f32.mrb[0].mxu0
      %2899 = vmatprep.mubr.bf16.mxu0 0
      %2900 = vmatmul.mubr.bf16.gmra.mrb[0].mxu0 %v2624
      %v2901 = vpop.f32.mrb[0].mxu0
      %v2902 = vadd.f32 %v2741, %v2901
      %v2903 = vpop.f32.mrb[0].mxu0
      %v2904 = vpop.f32.mrb[0].mxu0
      %v2905 = vadd.f32 %v2744, %v2904
      %v2906 = vpop.f32.mrb[0].mxu0
      %2907 = vmatprep.mubr.bf16.mxu0 0
      %2908 = vmatmul.mubr.bf16.gmra.mrb[0].mxu0 %v2627
      %v2909 = vpop.f32.mrb[0].mxu0
      %v2910 = vadd.f32 %v2749, %v2909
      %v2911 = vpop.f32.mrb[0].mxu0
      %v2912 = vpop.f32.mrb[0].mxu0
      %v2913 = vadd.f32 %v2752, %v2912
      %v2914 = vpop.f32.mrb[0].mxu0
      %2915 = vmatprep.mubr.bf16.mxu0 0
      %2916 = vmatmul.mubr.bf16.gmra.mrb[0].mxu0 %v2630
      %v2917 = vpop.f32.mrb[0].mxu0
      %v2918 = vadd.f32 %v2757, %v2917
      %v2919 = vpop.f32.mrb[0].mxu0
      %v2920 = vpop.f32.mrb[0].mxu0
      %v2921 = vadd.f32 %v2760, %v2920
      %v2922 = vpop.f32.mrb[0].mxu0
      %2923 = vmatprep.mubr.bf16.mxu0 0
      %2924 = vmatmul.mubr.bf16.gmra.mrb[0].mxu0 %v2633
      %v2925 = vpop.f32.mrb[0].mxu0
      %v2926 = vadd.f32 %v2765, %v2925
      %v2927 = vpop.f32.mrb[0].mxu0
      %v2928 = vpop.f32.mrb[0].mxu0
      %v2929 = vadd.f32 %v2768, %v2928
      %v2930 = vpop.f32.mrb[0].mxu0
      %2931 = vmatprep.mubr.bf16.mxu0 0
      %2932 = vmatmul.mubr.bf16.gmra.mrb[0].mxu0 %v2636
      %v2933 = vpop.f32.mrb[0].mxu0
      %v2934 = vadd.f32 %v2773, %v2933
      %v2935 = vpop.f32.mrb[0].mxu0
      %v2936 = vpop.f32.mrb[0].mxu0
      %v2937 = vadd.f32 %v2776, %v2936
      %v2938 = vpop.f32.mrb[0].mxu0
      %2939 = vmatprep.mubr.bf16.mxu0 0
      %2940 = vmatmul.mubr.bf16.gmra.mrb[0].mxu0 %v2639
      %v2941 = vpop.f32.mrb[0].mxu0
      %v2942 = vadd.f32 %v2781, %v2941
      %v2943 = vpop.f32.mrb[0].mxu0
      %v2944 = vpop.f32.mrb[0].mxu0
      %v2945 = vadd.f32 %v2784, %v2944
      %v2946 = vpop.f32.mrb[0].mxu0
      %2947 = vmatprep.mubr.bf16.mxu0 0
      %2948 = vmatmul.mubr.bf16.gmra.mrb[0].mxu0 %v2642
      %v2949 = vpop.f32.mrb[0].mxu0
      %v2950 = vadd.f32 %v2789, %v2949
      %v2951 = vpop.f32.mrb[0].mxu0
      %v2952 = vpop.f32.mrb[0].mxu0
      %v2953 = vadd.f32 %v2792, %v2952
      %v2954 = vpop.f32.mrb[0].mxu0
      %2955 = vmatprep.mubr.bf16.mxu0 0
      %2956 = vmatmul.mubr.bf16.gmra.mrb[0].mxu0 %v2645
      %v2957 = vpop.f32.mrb[0].mxu0
      %v2958 = vadd.f32 %v2797, %v2957
      %v2959 = vpop.f32.mrb[0].mxu0
      %v2960 = vpop.f32.mrb[0].mxu0
      %v2961 = vadd.f32 %v2800, %v2960
      %v2962 = vpop.f32.mrb[0].mxu0
      %2963 = vmatprep.mubr.bf16.mxu0 0
      %2964 = vmatmul.mubr.bf16.gmra.mrb[0].mxu0 %v2648
      %v2965 = vpop.f32.mrb[0].mxu0
      %v2966 = vadd.f32 %v2805, %v2965
      %v2967 = vpop.f32.mrb[0].mxu0
      %v2968 = vpop.f32.mrb[0].mxu0
      %v2969 = vadd.f32 %v2808, %v2968
      %v2970 = vpop.f32.mrb[0].mxu0
      %2971 = vdwg.mxu0
      %vm2972 = vcmp.gt.f32.partialorder %v2846, 0.0
      %vm2973 = vcmp.gt.f32.partialorder %v2849, 0.0
      %vm2974 = vcmp.gt.f32.partialorder %v2854, 0.0
      %vm2975 = vcmp.gt.f32.partialorder %v2857, 0.0
      %vm2976 = vcmp.gt.f32.partialorder %v2862, 0.0
      %vm2977 = vcmp.gt.f32.partialorder %v2865, 0.0
      %vm2978 = vcmp.gt.f32.partialorder %v2870, 0.0
      %vm2979 = vcmp.gt.f32.partialorder %v2873, 0.0
      %vm2980 = vcmp.gt.f32.partialorder %v2878, 0.0
      %vm2981 = vcmp.gt.f32.partialorder %v2881, 0.0
      %vm2982 = vcmp.gt.f32.partialorder %v2886, 0.0
      %vm2983 = vcmp.gt.f32.partialorder %v2889, 0.0
      %vm2984 = vcmp.gt.f32.partialorder %v2894, 0.0
      %vm2985 = vcmp.gt.f32.partialorder %v2897, 0.0
      %vm2986 = vcmp.gt.f32.partialorder %v2902, 0.0
      %vm2987 = vcmp.gt.f32.partialorder %v2905, 0.0
      %vm2988 = vcmp.gt.f32.partialorder %v2910, 0.0
      %vm2989 = vcmp.gt.f32.partialorder %v2913, 0.0
      %vm2990 = vcmp.gt.f32.partialorder %v2918, 0.0
      %vm2991 = vcmp.gt.f32.partialorder %v2921, 0.0
      %vm2992 = vcmp.gt.f32.partialorder %v2926, 0.0
      %vm2993 = vcmp.gt.f32.partialorder %v2929, 0.0
      %vm2994 = vcmp.gt.f32.partialorder %v2934, 0.0
      %vm2995 = vcmp.gt.f32.partialorder %v2937, 0.0
      %vm2996 = vcmp.gt.f32.partialorder %v2942, 0.0
      %vm2997 = vcmp.gt.f32.partialorder %v2945, 0.0
      %vm2998 = vcmp.gt.f32.partialorder %v2950, 0.0
      %vm2999 = vcmp.gt.f32.partialorder %v2953, 0.0
      %vm3000 = vcmp.gt.f32.partialorder %v2958, 0.0
      %vm3001 = vcmp.gt.f32.partialorder %v2961, 0.0
      %vm3002 = vcmp.gt.f32.partialorder %v2966, 0.0
      %vm3003 = vcmp.gt.f32.partialorder %v2969, 0.0
      %v3004 = vmul.f32 %v2846, 0.1
      %v3005 = vmul.f32 %v2849, 0.1
      %v3006 = vmul.f32 %v2854, 0.1
      %v3007 = vmul.f32 %v2857, 0.1
      %v3008 = vmul.f32 %v2862, 0.1
      %v3009 = vmul.f32 %v2865, 0.1
      %v3010 = vmul.f32 %v2870, 0.1
      %v3011 = vmul.f32 %v2873, 0.1
      %v3012 = vmul.f32 %v2878, 0.1
      %v3013 = vmul.f32 %v2881, 0.1
      %v3014 = vmul.f32 %v2886, 0.1
      %v3015 = vmul.f32 %v2889, 0.1
      %v3016 = vmul.f32 %v2894, 0.1
      %v3017 = vmul.f32 %v2897, 0.1
      %v3018 = vmul.f32 %v2902, 0.1
      %v3019 = vmul.f32 %v2905, 0.1
      %v3020 = vmul.f32 %v2910, 0.1
      %v3021 = vmul.f32 %v2913, 0.1
      %v3022 = vmul.f32 %v2918, 0.1
      %v3023 = vmul.f32 %v2921, 0.1
      %v3024 = vmul.f32 %v2926, 0.1
      %v3025 = vmul.f32 %v2929, 0.1
      %v3026 = vmul.f32 %v2934, 0.1
      %v3027 = vmul.f32 %v2937, 0.1
      %v3028 = vmul.f32 %v2942, 0.1
      %v3029 = vmul.f32 %v2945, 0.1
      %v3030 = vmul.f32 %v2950, 0.1
      %v3031 = vmul.f32 %v2953, 0.1
      %v3032 = vmul.f32 %v2958, 0.1
      %v3033 = vmul.f32 %v2961, 0.1
      %v3034 = vmul.f32 %v2966, 0.1
      %v3035 = vmul.f32 %v2969, 0.1
      %v3036 = vsel %vm2972, %v2846, %v3004
      %v3037 = vsel %vm2973, %v2849, %v3005
      %v3038 = vsel %vm2974, %v2854, %v3006
      %v3039 = vsel %vm2975, %v2857, %v3007
      %v3040 = vsel %vm2976, %v2862, %v3008
      %v3041 = vsel %vm2977, %v2865, %v3009
      %v3042 = vsel %vm2978, %v2870, %v3010
      %v3043 = vsel %vm2979, %v2873, %v3011
      %v3044 = vsel %vm2980, %v2878, %v3012
      %v3045 = vsel %vm2981, %v2881, %v3013
      %v3046 = vsel %vm2982, %v2886, %v3014
      %v3047 = vsel %vm2983, %v2889, %v3015
      %v3048 = vsel %vm2984, %v2894, %v3016
      %v3049 = vsel %vm2985, %v2897, %v3017
      %v3050 = vsel %vm2986, %v2902, %v3018
      %v3051 = vsel %vm2987, %v2905, %v3019
      %v3052 = vsel %vm2988, %v2910, %v3020
      %v3053 = vsel %vm2989, %v2913, %v3021
      %v3054 = vsel %vm2990, %v2918, %v3022
      %v3055 = vsel %vm2991, %v2921, %v3023
      %v3056 = vsel %vm2992, %v2926, %v3024
      %v3057 = vsel %vm2993, %v2929, %v3025
      %v3058 = vsel %vm2994, %v2934, %v3026
      %v3059 = vsel %vm2995, %v2937, %v3027
      %v3060 = vsel %vm2996, %v2942, %v3028
      %v3061 = vsel %vm2997, %v2945, %v3029
      %v3062 = vsel %vm2998, %v2950, %v3030
      %v3063 = vsel %vm2999, %v2953, %v3031
      %v3064 = vsel %vm3000, %v2958, %v3032
      %v3065 = vsel %vm3001, %v2961, %v3033
      %v3066 = vsel %vm3002, %v2966, %v3034
      %v3067 = vsel %vm3003, %v2969, %v3035
      %v3068 = vadd.f32 %v3036, %v226
      %v3069 = vadd.f32 %v3037, %v227
      %v3070 = vadd.f32 %v3038, %v228
      %v3071 = vadd.f32 %v3039, %v229
      %v3072 = vadd.f32 %v3040, %v230
      %v3073 = vadd.f32 %v3041, %v231
      %v3074 = vadd.f32 %v3042, %v232
      %v3075 = vadd.f32 %v3043, %v233
      %v3076 = vadd.f32 %v3044, %v234
      %v3077 = vadd.f32 %v3045, %v235
      %v3078 = vadd.f32 %v3046, %v236
      %v3079 = vadd.f32 %v3047, %v237
      %v3080 = vadd.f32 %v3048, %v238
      %v3081 = vadd.f32 %v3049, %v239
      %v3082 = vadd.f32 %v3050, %v240
      %v3083 = vadd.f32 %v3051, %v241
      %v3084 = vadd.f32 %v3052, %v242
      %v3085 = vadd.f32 %v3053, %v243
      %v3086 = vadd.f32 %v3054, %v244
      %v3087 = vadd.f32 %v3055, %v245
      %v3088 = vadd.f32 %v3056, %v246
      %v3089 = vadd.f32 %v3057, %v247
      %v3090 = vadd.f32 %v3058, %v248
      %v3091 = vadd.f32 %v3059, %v249
      %v3092 = vadd.f32 %v3060, %v250
      %v3093 = vadd.f32 %v3061, %v251
      %v3094 = vadd.f32 %v3062, %v252
      %v3095 = vadd.f32 %v3063, %v253
      %v3096 = vadd.f32 %v3064, %v254
      %v3097 = vadd.f32 %v3065, %v255
      %v3098 = vadd.f32 %v3066, %v256
      %v3099 = vadd.f32 %v3067, %v257
      %3100 = vst.msk [vmem:[%s224] sm:$0xff] %vm313, %v3068
      %3101 = vst.msk [vmem:[%s224 + $0x8] sm:$0xff] %vm313, %v3069
      %3102 = vst.msk [vmem:[%s224 + $0x10] sm:$0xff] %vm313, %v3070
      %3103 = vst.msk [vmem:[%s224 + $0x18] sm:$0xff] %vm313, %v3071
      %3104 = vst.msk [vmem:[%s224 + $0x20] sm:$0xff] %vm313, %v3072
      %3105 = vst.msk [vmem:[%s224 + $0x28] sm:$0xff] %vm313, %v3073
      %3106 = vst.msk [vmem:[%s224 + $0x30] sm:$0xff] %vm313, %v3074
      %3107 = vst.msk [vmem:[%s224 + $0x38] sm:$0xff] %vm313, %v3075
      %3108 = vst.msk [vmem:[%s224 + $0x40] sm:$0xff] %vm313, %v3076
      %3109 = vst.msk [vmem:[%s224 + $0x48] sm:$0xff] %vm313, %v3077
      %3110 = vst.msk [vmem:[%s224 + $0x50] sm:$0xff] %vm313, %v3078
      %3111 = vst.msk [vmem:[%s224 + $0x58] sm:$0xff] %vm313, %v3079
      %3112 = vst.msk [vmem:[%s224 + $0x60] sm:$0xff] %vm313, %v3080
      %3113 = vst.msk [vmem:[%s224 + $0x68] sm:$0xff] %vm313, %v3081
      %3114 = vst.msk [vmem:[%s224 + $0x70] sm:$0xff] %vm313, %v3082
      %3115 = vst.msk [vmem:[%s224 + $0x78] sm:$0xff] %vm313, %v3083
      %3116 = vst.msk [vmem:[%s224 + $0x80] sm:$0xff] %vm313, %v3084
      %3117 = vst.msk [vmem:[%s224 + $0x88] sm:$0xff] %vm313, %v3085
      %3118 = vst.msk [vmem:[%s224 + $0x90] sm:$0xff] %vm313, %v3086
      %3119 = vst.msk [vmem:[%s224 + $0x98] sm:$0xff] %vm313, %v3087
      %3120 = vst.msk [vmem:[%s224 + $0xa0] sm:$0xff] %vm313, %v3088
      %3121 = vst.msk [vmem:[%s224 + $0xa8] sm:$0xff] %vm313, %v3089
      %3122 = vst.msk [vmem:[%s224 + $0xb0] sm:$0xff] %vm313, %v3090
      %3123 = vst.msk [vmem:[%s224 + $0xb8] sm:$0xff] %vm313, %v3091
      %3124 = vst.msk [vmem:[%s224 + $0xc0] sm:$0xff] %vm313, %v3092
      %3125 = vst.msk [vmem:[%s224 + $0xc8] sm:$0xff] %vm313, %v3093
      %3126 = vst.msk [vmem:[%s224 + $0xd0] sm:$0xff] %vm313, %v3094
      %3127 = vst.msk [vmem:[%s224 + $0xd8] sm:$0xff] %vm313, %v3095
      %3128 = vst.msk [vmem:[%s224 + $0xe0] sm:$0xff] %vm313, %v3096
      %3129 = vst.msk [vmem:[%s224 + $0xe8] sm:$0xff] %vm313, %v3097
      %3130 = vst.msk [vmem:[%s224 + $0xf0] sm:$0xff] %vm313, %v3098
      %3131 = vst.msk [vmem:[%s224 + $0xf8] sm:$0xff] %vm313, %v3099
      %p3132 = scmp.lt.s32.totalorder %s16, 1
      %s3133 = scalar_select %p3132, %s16, 1
      %s3134 = smul.addr %s3133, 32
      %s3135 = smul.addr %s3134, 8
      %s3136 = scalar_lea.vmem %s5, %s3135
      // Predicated region
      $region41: #{tpu_custom_call.1} parent=39 // pred_check
        %p3137 = pneg %p144
      $region42: #{tpu_custom_call.1} parent=39 // pred_check_branch
        %3139 = sbr.rel (%p3137) target = $region44
      $region43: #{tpu_custom_call.1} parent=39 // pred_region
        _
      $region44: #{tpu_custom_call.1} parent=39 // pred_fallthru
        _
    $region40: #{tpu_custom_call.1} parent=5 // pred_fallthru
      _
    %p3140 = scmp.le.s32.totalorder 2, %s11
    // Predicated region
    $region45: #{tpu_custom_call.1} parent=5 // pred_check
      %p3141 = pneg %p3140
    $region46: #{tpu_custom_call.1} parent=5 // pred_check_branch
      %3143 = sbr.rel (%p3141) target = $region48
    $region47: #{tpu_custom_call.1} parent=5 // pred_region
      %s3144 = ssub.s32 %s11, 2
      // Predicated region
      $region49: #{tpu_custom_call.1} parent=47 // pred_check
        %p3145 = pneg %p150
      $region50: #{tpu_custom_call.1} parent=47 // pred_check_branch
        %3147 = sbr.rel (%p3145) target = $region52
      $region51: #{tpu_custom_call.1} parent=47 // pred_region
        %p3148 = scmp.lt.s32.totalorder %s17, 1
        %s3149 = scalar_select %p3148, %s17, 1
        %s3150 = smul.addr %s3149, 32
        %s3151 = smul.addr %s3150, 8
        %s3152 = scalar_lea.vmem %s5, %s3151
      $region52: #{tpu_custom_call.1} parent=47 // pred_fallthru
        _
    $region48: #{tpu_custom_call.1} parent=5 // pred_fallthru
      _
  $region6: #{tpu_custom_call.1} parent=0 // loop_footer
    %s15 = sadd.s32 1, %s11
  $region7: #{tpu_custom_call.1} parent=0 // loop_footer_branch
    %10 = sbr.rel target = $region3
  $region8: #{tpu_custom_call.1} parent=0 // loop_exit
    _

</llo_original>
